<compile_context>
chip_gen: v7x
topology: tpu7x:2x2x1
jax: 0.10.0
libtpu: 0.0.40
codegen_flags: <defaults>
</compile_context>

<pallas_src>
import jax
import jax.numpy as jnp
from jax import lax
from jax.experimental import pallas as pl
from jax.experimental.pallas import tpu as pltpu


# ----------------------------------------------------------------------------
# Fused kernel: embedding gather + both LSTMs + classifier head, all in VMEM.
# ----------------------------------------------------------------------------
def fused_forward_kernel(idsA_ref, idsB_ref,          # SMEM (B, T) int32
                         tableA_ref, tableB_ref,       # VMEM (V, 8H) pre-projected
                         bias_ref,                     # VMEM (1, 8H)
                         whh_ref,                      # VMEM (4H, 8H) block-diag
                         w1_ref, b1_ref,               # VMEM (4H, H), (1, H)
                         w2_ref, b2_ref,               # VMEM (H, C), (1, C)
                         out_ref):                     # VMEM (B, C)
    B, T = idsA_ref.shape
    H8 = tableA_ref.shape[-1]
    H4 = H8 // 2          # 128 lanes: state width (duplicated [A|B|A|B])
    H2 = H8 // 4          # 64 lanes:  one [A|B] half

    bias = bias_ref[...]

    # ---- Fused embedding gather + input projection (hoisted off the serial
    # path).  tableX = emb_X @ W_ihX^T (folded at parameter time), so each
    # token needs only a dynamic (1, 8H) row load; lane layout per row is
    # [i_A|i_B|f_A|f_B|g_A|g_B|o_A|o_B].
    gx = []
    for t in range(T):
        rows = []
        for b in range(B):
            ia = idsA_ref[b, t]                       # SMEM scalar reads
            ib = idsB_ref[b, t]
            ra = tableA_ref[pl.ds(ia, 1), :]          # (1, 8H)
            rb = tableB_ref[pl.ds(ib, 1), :]
            rows.append(ra + rb)
        gx.append(jnp.concatenate(rows, axis=0) + bias)   # (B, 8H), time-major

    whh = whh_ref[...]                                # hoisted weight load
    lane = lax.broadcasted_iota(jnp.int32, (B, H4), 1)
    first_half = lane < H2                            # hoisted lane mask

    # Duplicated state: h = [h_A | h_B | h_A | h_B], c likewise  (B, 4H).
    h = jnp.zeros((B, H4), jnp.float32)
    c = jnp.zeros((B, H4), jnp.float32)

    # Statically unrolled recurrence: ONE (B,4H)@(4H,8H) dot per step.
    for t in range(T):
        z = gx[t] + jnp.dot(h, whh, preferred_element_type=jnp.float32)  # (B, 8H)
        z_if = z[:, :H4]           # [i_A|i_B|f_A|f_B]   (full-vreg slice, free)
        z_go = z[:, H4:]           # [g_A|g_B|o_A|o_B]

        # sigmoid(x) = 0.5*tanh(0.5*x)+0.5  -> one EUP tanh per 128-lane vreg.
        act_if = 0.5 * jnp.tanh(0.5 * z_if) + 0.5
        t_go = jnp.tanh(jnp.where(first_half, z_go, 0.5 * z_go))
        act_go = jnp.where(first_half, t_go, 0.5 * t_go + 0.5)   # tanh(g) | sigmoid(o)

        # c' = f*c + i*g and h' = o*tanh(c'), built with masks + lane rolls
        # (XLU) instead of sub-vreg lane slices.
        prod = jnp.where(first_half, act_if * act_go, act_if * c)   # [i*g | f*c]
        c = prod + pltpu.roll(prod, shift=H2, axis=1)               # [c' | c']
        o_dup = jnp.where(first_half, pltpu.roll(act_go, shift=H2, axis=1), act_go)
        h = o_dup * jnp.tanh(c)                                     # [h' | h']

    # Head: concat([h_A,h_B]) @ W1^T is just h_dup @ W1_pad (bottom rows zero).
    hidden = jnp.maximum(
        jnp.dot(h, w1_ref[...], preferred_element_type=jnp.float32) + b1_ref[...],
        0.0)
    # TODO(synk): dropout omitted (eval-mode identity).
    out_ref[...] = (jnp.dot(hidden, w2_ref[...], preferred_element_type=jnp.float32)
                    + b2_ref[...]).astype(out_ref.dtype)


# ----------------------------------------------------------------------------
# Parameters in the PyTorch layouts (source of truth for the reference).
# ----------------------------------------------------------------------------
def make_torch_params(key, vocab_size, embed_dim, hidden_dim, num_classes):
    ks = jax.random.split(key, 14)
    scale = 0.1

    def init(k, shape):
        return scale * jax.random.normal(k, shape, dtype=jnp.float32)

    H = hidden_dim
    return {
        "emb_A": init(ks[0], (vocab_size, embed_dim)).at[0].set(0.0),  # padding_idx=0
        "emb_B": init(ks[1], (vocab_size, embed_dim)).at[0].set(0.0),
        "wihA": init(ks[2], (4 * H, embed_dim)), "whhA": init(ks[3], (4 * H, H)),
        "bihA": init(ks[4], (4 * H,)),           "bhhA": init(ks[5], (4 * H,)),
        "wihB": init(ks[6], (4 * H, embed_dim)), "whhB": init(ks[7], (4 * H, H)),
        "bihB": init(ks[8], (4 * H,)),           "bhhB": init(ks[9], (4 * H,)),
        "fc0_w": init(ks[10], (H, 2 * H)),       "fc0_b": init(ks[11], (H,)),
        "fc1_w": init(ks[12], (num_classes, H)), "fc1_b": init(ks[13], (num_classes,)),
    }


# ----------------------------------------------------------------------------
# One-time conversion: torch layouts -> fused/packed kernel layouts.
# Lane blocks (H each): [i_A|i_B|f_A|f_B|g_A|g_B|o_A|o_B].
# ----------------------------------------------------------------------------
def convert_kernel_params(tp, hidden_dim):
    H = hidden_dim

    def gate_rows(w):
        return [w[g * H:(g + 1) * H] for g in range(4)]

    def pack_lstm(emb, w_ih, w_hh, b_ih, b_hh, side):
        V = emb.shape[0]
        wih_g, whh_g = gate_rows(w_ih), gate_rows(w_hh)
        b_g = gate_rows(b_ih + b_hh)
        table = jnp.zeros((V, 8 * H), jnp.float32)        # emb @ W_ih^T, folded
        whh_c = jnp.zeros((2 * H, 8 * H), jnp.float32)    # rows <-> [h_A | h_B]
        bias = jnp.zeros((1, 8 * H), jnp.float32)
        for g in range(4):
            c0 = (2 * g + side) * H
            table = table.at[:, c0:c0 + H].set(emb @ wih_g[g].T)
            whh_c = whh_c.at[side * H:(side + 1) * H, c0:c0 + H].set(whh_g[g].T)
            bias = bias.at[:, c0:c0 + H].set(b_g[g][None, :])
        return table, whh_c, bias

    tA, whhA, bA = pack_lstm(tp["emb_A"], tp["wihA"], tp["whhA"],
                             tp["bihA"], tp["bhhA"], side=0)
    tB, whhB, bB = pack_lstm(tp["emb_B"], tp["wihB"], tp["whhB"],
                             tp["bihB"], tp["bhhB"], side=1)

    # Contraction rows for the duplicated state [h_A|h_B|h_A|h_B]: bottom half zero.
    whh = jnp.concatenate([whhA + whhB, jnp.zeros((2 * H, 8 * H), jnp.float32)], axis=0)
    # fc[0] consumes lanes 0:2H of the duplicated state -> pad bottom rows with zeros.
    w1 = jnp.concatenate([tp["fc0_w"].T, jnp.zeros((2 * H, H), jnp.float32)], axis=0)
    return {
        "table_A": tA, "table_B": tB, "bias": bA + bB, "whh": whh,
        "w1": w1, "b1": tp["fc0_b"][None, :],
        "w2": tp["fc1_w"].T, "b2": tp["fc1_b"][None, :],
    }


# ----------------------------------------------------------------------------
# Forward wrapper: everything (gather + LSTMs + head) is one pallas_call.
# ----------------------------------------------------------------------------
@jax.jit
def forward(kp, ids_A, ids_B):
    B, _ = ids_A.shape
    C = kp["b2"].shape[-1]
    smem = pl.BlockSpec(memory_space=pltpu.MemorySpace.SMEM)
    vmem = pl.BlockSpec(memory_space=pltpu.MemorySpace.VMEM)
    return pl.pallas_call(
        fused_forward_kernel,
        out_shape=jax.ShapeDtypeStruct((B, C), jnp.float32),
        in_specs=[smem, smem] + [vmem] * 8,
        out_specs=vmem,
    )(ids_A, ids_B, kp["table_A"], kp["table_B"], kp["bias"], kp["whh"],
      kp["w1"], kp["b1"], kp["w2"], kp["b2"])


# ----------------------------------------------------------------------------
# Pure-JAX reference (exact PyTorch math, eval mode) for sanity checking.
# ----------------------------------------------------------------------------
def forward_ref(tp, ids_A, ids_B):
    def lstm(ids, emb, w_ih, w_hh, b_ih, b_hh):
        x = jnp.take(emb, ids, axis=0)                # (B, T, E)
        B = x.shape[0]
        H = w_hh.shape[1]

        def step(carry, x_t):
            h, c = carry
            z = x_t @ w_ih.T + h @ w_hh.T + b_ih + b_hh
            i = jax.nn.sigmoid(z[:, 0:H])
            f = jax.nn.sigmoid(z[:, H:2 * H])
            g = jnp.tanh(z[:, 2 * H:3 * H])
            o = jax.nn.sigmoid(z[:, 3 * H:4 * H])
            c = f * c + i * g
            h = o * jnp.tanh(c)
            return (h, c), None

        (h, _), _ = lax.scan(step, (jnp.zeros((B, H)), jnp.zeros((B, H))),
                             jnp.transpose(x, (1, 0, 2)))
        return h

    h_A = lstm(ids_A, tp["emb_A"], tp["wihA"], tp["whhA"], tp["bihA"], tp["bhhA"])
    h_B = lstm(ids_B, tp["emb_B"], tp["wihB"], tp["whhB"], tp["bihB"], tp["bhhB"])
    feats = jnp.concatenate([h_A, h_B], axis=1)
    hidden = jnp.maximum(feats @ tp["fc0_w"].T + tp["fc0_b"], 0.0)
    return hidden @ tp["fc1_w"].T + tp["fc1_b"]


if __name__ == "__main__":
    vocab_size, embed_dim, hidden_dim, num_classes, max_length = 50, 16, 32, 3, 8
    batch = 2

    key = jax.random.PRNGKey(0)
    k_params, k_a, k_b = jax.random.split(key, 3)
    tparams = make_torch_params(k_params, vocab_size, embed_dim, hidden_dim, num_classes)
    kparams = convert_kernel_params(tparams, hidden_dim)

    ids_A = jax.random.randint(k_a, (batch, max_length), 0, vocab_size, dtype=jnp.int32)
    ids_B = jax.random.randint(k_b, (batch, max_length), 0, vocab_size, dtype=jnp.int32)

    logits = jax.block_until_ready(forward(kparams, ids_A, ids_B))
    ref = forward_ref(tparams, ids_A, ids_B)

    assert logits.shape == (batch, num_classes)
    assert jnp.allclose(logits, ref, atol=2e-4, rtol=2e-4), (logits, ref)

    print("KERNEL_OK")
</pallas_src>

<mosaic_0001>
module attributes {stable_mosaic.version = 11 : i64} {
  func.func @fused_forward_kernel(%arg0: memref<2x8xi32, #tpu.memory_space<smem>>, %arg1: memref<2x8xi32, #tpu.memory_space<smem>>, %arg2: memref<50x256xf32, #tpu.memory_space<vmem>>, %arg3: memref<50x256xf32, #tpu.memory_space<vmem>>, %arg4: memref<1x256xf32, #tpu.memory_space<vmem>>, %arg5: memref<128x256xf32, #tpu.memory_space<vmem>>, %arg6: memref<128x32xf32, #tpu.memory_space<vmem>>, %arg7: memref<1x32xf32, #tpu.memory_space<vmem>>, %arg8: memref<32x3xf32, #tpu.memory_space<vmem>>, %arg9: memref<1x3xf32, #tpu.memory_space<vmem>>, %arg10: memref<2x3xf32, #tpu.memory_space<vmem>>) attributes {dimension_semantics = [], scalar_prefetch = 0 : i64, scratch_operands = 0 : i64, tpu.core_type = #tpu.core_type<tc>} {
    %c0 = arith.constant 0 : index
    %c0_0 = arith.constant 0 : index
    %0 = vector.load %arg4[%c0, %c0_0] : memref<1x256xf32, #tpu.memory_space<vmem>>, vector<1x256xf32>
    %c0_1 = arith.constant 0 : index
    %c0_2 = arith.constant 0 : index
    %1 = memref.load %arg0[%c0_1, %c0_2] : memref<2x8xi32, #tpu.memory_space<smem>>
    %c0_3 = arith.constant 0 : index
    %c0_4 = arith.constant 0 : index
    %2 = memref.load %arg1[%c0_3, %c0_4] : memref<2x8xi32, #tpu.memory_space<smem>>
    %3 = arith.index_cast %1 : i32 to index
    %c0_5 = arith.constant 0 : index
    %4 = vector.load %arg2[%3, %c0_5] : memref<50x256xf32, #tpu.memory_space<vmem>>, vector<1x256xf32>
    %5 = arith.index_cast %2 : i32 to index
    %c0_6 = arith.constant 0 : index
    %6 = vector.load %arg3[%5, %c0_6] : memref<50x256xf32, #tpu.memory_space<vmem>>, vector<1x256xf32>
    %7 = arith.addf %4, %6 : vector<1x256xf32>
    %c1 = arith.constant 1 : index
    %c0_7 = arith.constant 0 : index
    %8 = memref.load %arg0[%c1, %c0_7] : memref<2x8xi32, #tpu.memory_space<smem>>
    %c1_8 = arith.constant 1 : index
    %c0_9 = arith.constant 0 : index
    %9 = memref.load %arg1[%c1_8, %c0_9] : memref<2x8xi32, #tpu.memory_space<smem>>
    %10 = arith.index_cast %8 : i32 to index
    %c0_10 = arith.constant 0 : index
    %11 = vector.load %arg2[%10, %c0_10] : memref<50x256xf32, #tpu.memory_space<vmem>>, vector<1x256xf32>
    %12 = arith.index_cast %9 : i32 to index
    %c0_11 = arith.constant 0 : index
    %13 = vector.load %arg3[%12, %c0_11] : memref<50x256xf32, #tpu.memory_space<vmem>>, vector<1x256xf32>
    %14 = arith.addf %11, %13 : vector<1x256xf32>
    %15 = tpu.concatenate %7, %14 in 0 : vector<1x256xf32>, vector<1x256xf32> -> vector<2x256xf32>
    %16 = vector.broadcast %0 : vector<1x256xf32> to vector<2x256xf32>
    %17 = arith.addf %15, %16 : vector<2x256xf32>
    %c0_12 = arith.constant 0 : index
    %c1_13 = arith.constant 1 : index
    %18 = memref.load %arg0[%c0_12, %c1_13] : memref<2x8xi32, #tpu.memory_space<smem>>
    %c0_14 = arith.constant 0 : index
    %c1_15 = arith.constant 1 : index
    %19 = memref.load %arg1[%c0_14, %c1_15] : memref<2x8xi32, #tpu.memory_space<smem>>
    %20 = arith.index_cast %18 : i32 to index
    %c0_16 = arith.constant 0 : index
    %21 = vector.load %arg2[%20, %c0_16] : memref<50x256xf32, #tpu.memory_space<vmem>>, vector<1x256xf32>
    %22 = arith.index_cast %19 : i32 to index
    %c0_17 = arith.constant 0 : index
    %23 = vector.load %arg3[%22, %c0_17] : memref<50x256xf32, #tpu.memory_space<vmem>>, vector<1x256xf32>
    %24 = arith.addf %21, %23 : vector<1x256xf32>
    %c1_18 = arith.constant 1 : index
    %c1_19 = arith.constant 1 : index
    %25 = memref.load %arg0[%c1_18, %c1_19] : memref<2x8xi32, #tpu.memory_space<smem>>
    %c1_20 = arith.constant 1 : index
    %c1_21 = arith.constant 1 : index
    %26 = memref.load %arg1[%c1_20, %c1_21] : memref<2x8xi32, #tpu.memory_space<smem>>
    %27 = arith.index_cast %25 : i32 to index
    %c0_22 = arith.constant 0 : index
    %28 = vector.load %arg2[%27, %c0_22] : memref<50x256xf32, #tpu.memory_space<vmem>>, vector<1x256xf32>
    %29 = arith.index_cast %26 : i32 to index
    %c0_23 = arith.constant 0 : index
    %30 = vector.load %arg3[%29, %c0_23] : memref<50x256xf32, #tpu.memory_space<vmem>>, vector<1x256xf32>
    %31 = arith.addf %28, %30 : vector<1x256xf32>
    %32 = tpu.concatenate %24, %31 in 0 : vector<1x256xf32>, vector<1x256xf32> -> vector<2x256xf32>
    %33 = vector.broadcast %0 : vector<1x256xf32> to vector<2x256xf32>
    %34 = arith.addf %32, %33 : vector<2x256xf32>
    %c0_24 = arith.constant 0 : index
    %c2 = arith.constant 2 : index
    %35 = memref.load %arg0[%c0_24, %c2] : memref<2x8xi32, #tpu.memory_space<smem>>
    %c0_25 = arith.constant 0 : index
    %c2_26 = arith.constant 2 : index
    %36 = memref.load %arg1[%c0_25, %c2_26] : memref<2x8xi32, #tpu.memory_space<smem>>
    %37 = arith.index_cast %35 : i32 to index
    %c0_27 = arith.constant 0 : index
    %38 = vector.load %arg2[%37, %c0_27] : memref<50x256xf32, #tpu.memory_space<vmem>>, vector<1x256xf32>
    %39 = arith.index_cast %36 : i32 to index
    %c0_28 = arith.constant 0 : index
    %40 = vector.load %arg3[%39, %c0_28] : memref<50x256xf32, #tpu.memory_space<vmem>>, vector<1x256xf32>
    %41 = arith.addf %38, %40 : vector<1x256xf32>
    %c1_29 = arith.constant 1 : index
    %c2_30 = arith.constant 2 : index
    %42 = memref.load %arg0[%c1_29, %c2_30] : memref<2x8xi32, #tpu.memory_space<smem>>
    %c1_31 = arith.constant 1 : index
    %c2_32 = arith.constant 2 : index
    %43 = memref.load %arg1[%c1_31, %c2_32] : memref<2x8xi32, #tpu.memory_space<smem>>
    %44 = arith.index_cast %42 : i32 to index
    %c0_33 = arith.constant 0 : index
    %45 = vector.load %arg2[%44, %c0_33] : memref<50x256xf32, #tpu.memory_space<vmem>>, vector<1x256xf32>
    %46 = arith.index_cast %43 : i32 to index
    %c0_34 = arith.constant 0 : index
    %47 = vector.load %arg3[%46, %c0_34] : memref<50x256xf32, #tpu.memory_space<vmem>>, vector<1x256xf32>
    %48 = arith.addf %45, %47 : vector<1x256xf32>
    %49 = tpu.concatenate %41, %48 in 0 : vector<1x256xf32>, vector<1x256xf32> -> vector<2x256xf32>
    %50 = vector.broadcast %0 : vector<1x256xf32> to vector<2x256xf32>
    %51 = arith.addf %49, %50 : vector<2x256xf32>
    %c0_35 = arith.constant 0 : index
    %c3 = arith.constant 3 : index
    %52 = memref.load %arg0[%c0_35, %c3] : memref<2x8xi32, #tpu.memory_space<smem>>
    %c0_36 = arith.constant 0 : index
    %c3_37 = arith.constant 3 : index
    %53 = memref.load %arg1[%c0_36, %c3_37] : memref<2x8xi32, #tpu.memory_space<smem>>
    %54 = arith.index_cast %52 : i32 to index
    %c0_38 = arith.constant 0 : index
    %55 = vector.load %arg2[%54, %c0_38] : memref<50x256xf32, #tpu.memory_space<vmem>>, vector<1x256xf32>
    %56 = arith.index_cast %53 : i32 to index
    %c0_39 = arith.constant 0 : index
    %57 = vector.load %arg3[%56, %c0_39] : memref<50x256xf32, #tpu.memory_space<vmem>>, vector<1x256xf32>
    %58 = arith.addf %55, %57 : vector<1x256xf32>
    %c1_40 = arith.constant 1 : index
    %c3_41 = arith.constant 3 : index
    %59 = memref.load %arg0[%c1_40, %c3_41] : memref<2x8xi32, #tpu.memory_space<smem>>
    %c1_42 = arith.constant 1 : index
    %c3_43 = arith.constant 3 : index
    %60 = memref.load %arg1[%c1_42, %c3_43] : memref<2x8xi32, #tpu.memory_space<smem>>
    %61 = arith.index_cast %59 : i32 to index
    %c0_44 = arith.constant 0 : index
    %62 = vector.load %arg2[%61, %c0_44] : memref<50x256xf32, #tpu.memory_space<vmem>>, vector<1x256xf32>
    %63 = arith.index_cast %60 : i32 to index
    %c0_45 = arith.constant 0 : index
    %64 = vector.load %arg3[%63, %c0_45] : memref<50x256xf32, #tpu.memory_space<vmem>>, vector<1x256xf32>
    %65 = arith.addf %62, %64 : vector<1x256xf32>
    %66 = tpu.concatenate %58, %65 in 0 : vector<1x256xf32>, vector<1x256xf32> -> vector<2x256xf32>
    %67 = vector.broadcast %0 : vector<1x256xf32> to vector<2x256xf32>
    %68 = arith.addf %66, %67 : vector<2x256xf32>
    %c0_46 = arith.constant 0 : index
    %c4 = arith.constant 4 : index
    %69 = memref.load %arg0[%c0_46, %c4] : memref<2x8xi32, #tpu.memory_space<smem>>
    %c0_47 = arith.constant 0 : index
    %c4_48 = arith.constant 4 : index
    %70 = memref.load %arg1[%c0_47, %c4_48] : memref<2x8xi32, #tpu.memory_space<smem>>
    %71 = arith.index_cast %69 : i32 to index
    %c0_49 = arith.constant 0 : index
    %72 = vector.load %arg2[%71, %c0_49] : memref<50x256xf32, #tpu.memory_space<vmem>>, vector<1x256xf32>
    %73 = arith.index_cast %70 : i32 to index
    %c0_50 = arith.constant 0 : index
    %74 = vector.load %arg3[%73, %c0_50] : memref<50x256xf32, #tpu.memory_space<vmem>>, vector<1x256xf32>
    %75 = arith.addf %72, %74 : vector<1x256xf32>
    %c1_51 = arith.constant 1 : index
    %c4_52 = arith.constant 4 : index
    %76 = memref.load %arg0[%c1_51, %c4_52] : memref<2x8xi32, #tpu.memory_space<smem>>
    %c1_53 = arith.constant 1 : index
    %c4_54 = arith.constant 4 : index
    %77 = memref.load %arg1[%c1_53, %c4_54] : memref<2x8xi32, #tpu.memory_space<smem>>
    %78 = arith.index_cast %76 : i32 to index
    %c0_55 = arith.constant 0 : index
    %79 = vector.load %arg2[%78, %c0_55] : memref<50x256xf32, #tpu.memory_space<vmem>>, vector<1x256xf32>
    %80 = arith.index_cast %77 : i32 to index
    %c0_56 = arith.constant 0 : index
    %81 = vector.load %arg3[%80, %c0_56] : memref<50x256xf32, #tpu.memory_space<vmem>>, vector<1x256xf32>
    %82 = arith.addf %79, %81 : vector<1x256xf32>
    %83 = tpu.concatenate %75, %82 in 0 : vector<1x256xf32>, vector<1x256xf32> -> vector<2x256xf32>
    %84 = vector.broadcast %0 : vector<1x256xf32> to vector<2x256xf32>
    %85 = arith.addf %83, %84 : vector<2x256xf32>
    %c0_57 = arith.constant 0 : index
    %c5 = arith.constant 5 : index
    %86 = memref.load %arg0[%c0_57, %c5] : memref<2x8xi32, #tpu.memory_space<smem>>
    %c0_58 = arith.constant 0 : index
    %c5_59 = arith.constant 5 : index
    %87 = memref.load %arg1[%c0_58, %c5_59] : memref<2x8xi32, #tpu.memory_space<smem>>
    %88 = arith.index_cast %86 : i32 to index
    %c0_60 = arith.constant 0 : index
    %89 = vector.load %arg2[%88, %c0_60] : memref<50x256xf32, #tpu.memory_space<vmem>>, vector<1x256xf32>
    %90 = arith.index_cast %87 : i32 to index
    %c0_61 = arith.constant 0 : index
    %91 = vector.load %arg3[%90, %c0_61] : memref<50x256xf32, #tpu.memory_space<vmem>>, vector<1x256xf32>
    %92 = arith.addf %89, %91 : vector<1x256xf32>
    %c1_62 = arith.constant 1 : index
    %c5_63 = arith.constant 5 : index
    %93 = memref.load %arg0[%c1_62, %c5_63] : memref<2x8xi32, #tpu.memory_space<smem>>
    %c1_64 = arith.constant 1 : index
    %c5_65 = arith.constant 5 : index
    %94 = memref.load %arg1[%c1_64, %c5_65] : memref<2x8xi32, #tpu.memory_space<smem>>
    %95 = arith.index_cast %93 : i32 to index
    %c0_66 = arith.constant 0 : index
    %96 = vector.load %arg2[%95, %c0_66] : memref<50x256xf32, #tpu.memory_space<vmem>>, vector<1x256xf32>
    %97 = arith.index_cast %94 : i32 to index
    %c0_67 = arith.constant 0 : index
    %98 = vector.load %arg3[%97, %c0_67] : memref<50x256xf32, #tpu.memory_space<vmem>>, vector<1x256xf32>
    %99 = arith.addf %96, %98 : vector<1x256xf32>
    %100 = tpu.concatenate %92, %99 in 0 : vector<1x256xf32>, vector<1x256xf32> -> vector<2x256xf32>
    %101 = vector.broadcast %0 : vector<1x256xf32> to vector<2x256xf32>
    %102 = arith.addf %100, %101 : vector<2x256xf32>
    %c0_68 = arith.constant 0 : index
    %c6 = arith.constant 6 : index
    %103 = memref.load %arg0[%c0_68, %c6] : memref<2x8xi32, #tpu.memory_space<smem>>
    %c0_69 = arith.constant 0 : index
    %c6_70 = arith.constant 6 : index
    %104 = memref.load %arg1[%c0_69, %c6_70] : memref<2x8xi32, #tpu.memory_space<smem>>
    %105 = arith.index_cast %103 : i32 to index
    %c0_71 = arith.constant 0 : index
    %106 = vector.load %arg2[%105, %c0_71] : memref<50x256xf32, #tpu.memory_space<vmem>>, vector<1x256xf32>
    %107 = arith.index_cast %104 : i32 to index
    %c0_72 = arith.constant 0 : index
    %108 = vector.load %arg3[%107, %c0_72] : memref<50x256xf32, #tpu.memory_space<vmem>>, vector<1x256xf32>
    %109 = arith.addf %106, %108 : vector<1x256xf32>
    %c1_73 = arith.constant 1 : index
    %c6_74 = arith.constant 6 : index
    %110 = memref.load %arg0[%c1_73, %c6_74] : memref<2x8xi32, #tpu.memory_space<smem>>
    %c1_75 = arith.constant 1 : index
    %c6_76 = arith.constant 6 : index
    %111 = memref.load %arg1[%c1_75, %c6_76] : memref<2x8xi32, #tpu.memory_space<smem>>
    %112 = arith.index_cast %110 : i32 to index
    %c0_77 = arith.constant 0 : index
    %113 = vector.load %arg2[%112, %c0_77] : memref<50x256xf32, #tpu.memory_space<vmem>>, vector<1x256xf32>
    %114 = arith.index_cast %111 : i32 to index
    %c0_78 = arith.constant 0 : index
    %115 = vector.load %arg3[%114, %c0_78] : memref<50x256xf32, #tpu.memory_space<vmem>>, vector<1x256xf32>
    %116 = arith.addf %113, %115 : vector<1x256xf32>
    %117 = tpu.concatenate %109, %116 in 0 : vector<1x256xf32>, vector<1x256xf32> -> vector<2x256xf32>
    %118 = vector.broadcast %0 : vector<1x256xf32> to vector<2x256xf32>
    %119 = arith.addf %117, %118 : vector<2x256xf32>
    %c0_79 = arith.constant 0 : index
    %c7 = arith.constant 7 : index
    %120 = memref.load %arg0[%c0_79, %c7] : memref<2x8xi32, #tpu.memory_space<smem>>
    %c0_80 = arith.constant 0 : index
    %c7_81 = arith.constant 7 : index
    %121 = memref.load %arg1[%c0_80, %c7_81] : memref<2x8xi32, #tpu.memory_space<smem>>
    %122 = arith.index_cast %120 : i32 to index
    %c0_82 = arith.constant 0 : index
    %123 = vector.load %arg2[%122, %c0_82] : memref<50x256xf32, #tpu.memory_space<vmem>>, vector<1x256xf32>
    %124 = arith.index_cast %121 : i32 to index
    %c0_83 = arith.constant 0 : index
    %125 = vector.load %arg3[%124, %c0_83] : memref<50x256xf32, #tpu.memory_space<vmem>>, vector<1x256xf32>
    %126 = arith.addf %123, %125 : vector<1x256xf32>
    %c1_84 = arith.constant 1 : index
    %c7_85 = arith.constant 7 : index
    %127 = memref.load %arg0[%c1_84, %c7_85] : memref<2x8xi32, #tpu.memory_space<smem>>
    %c1_86 = arith.constant 1 : index
    %c7_87 = arith.constant 7 : index
    %128 = memref.load %arg1[%c1_86, %c7_87] : memref<2x8xi32, #tpu.memory_space<smem>>
    %129 = arith.index_cast %127 : i32 to index
    %c0_88 = arith.constant 0 : index
    %130 = vector.load %arg2[%129, %c0_88] : memref<50x256xf32, #tpu.memory_space<vmem>>, vector<1x256xf32>
    %131 = arith.index_cast %128 : i32 to index
    %c0_89 = arith.constant 0 : index
    %132 = vector.load %arg3[%131, %c0_89] : memref<50x256xf32, #tpu.memory_space<vmem>>, vector<1x256xf32>
    %133 = arith.addf %130, %132 : vector<1x256xf32>
    %134 = tpu.concatenate %126, %133 in 0 : vector<1x256xf32>, vector<1x256xf32> -> vector<2x256xf32>
    %135 = vector.broadcast %0 : vector<1x256xf32> to vector<2x256xf32>
    %136 = arith.addf %134, %135 : vector<2x256xf32>
    %c0_90 = arith.constant 0 : index
    %c0_91 = arith.constant 0 : index
    %137 = vector.load %arg5[%c0_90, %c0_91] : memref<128x256xf32, #tpu.memory_space<vmem>>, vector<128x256xf32>
    %138 = tpu.iota {dimensions = array<i32: 1>} : vector<2x128xi32>
    %c64_i32 = arith.constant 64 : i32
    %139 = vector.broadcast %c64_i32 : i32 to vector<2x128xi32>
    %140 = arith.cmpi slt, %138, %139 : vector<2x128xi32>
    %cst = arith.constant 0.000000e+00 : f32
    %141 = vector.broadcast %cst : f32 to vector<2x128xf32>
    %cst_92 = arith.constant 0.000000e+00 : f32
    %142 = vector.broadcast %cst_92 : f32 to vector<2x128xf32>
    %cst_93 = arith.constant dense<0.000000e+00> : vector<2x256xf32>
    %143 = tpu.matmul %141, %137, %cst_93 {dimension_numbers = #tpu.dot_dimension_numbers<[1], [0], [0], [1], [0, 0, 1, 1], [], []>} : vector<2x128xf32>, vector<128x256xf32>, vector<2x256xf32> -> vector<2x256xf32>
    %144 = arith.addf %17, %143 : vector<2x256xf32>
    %145 = vector.extract_strided_slice %144 {offsets = [0, 0], sizes = [2, 128], strides = [1, 1]} : vector<2x256xf32> to vector<2x128xf32>
    %146 = vector.extract_strided_slice %144 {offsets = [0, 128], sizes = [2, 128], strides = [1, 1]} : vector<2x256xf32> to vector<2x128xf32>
    %cst_94 = arith.constant 5.000000e-01 : f32
    %147 = vector.broadcast %cst_94 : f32 to vector<2x128xf32>
    %148 = arith.mulf %147, %145 : vector<2x128xf32>
    %149 = math.tanh %148 : vector<2x128xf32>
    %cst_95 = arith.constant 5.000000e-01 : f32
    %150 = vector.broadcast %cst_95 : f32 to vector<2x128xf32>
    %151 = arith.mulf %150, %149 : vector<2x128xf32>
    %cst_96 = arith.constant 5.000000e-01 : f32
    %152 = vector.broadcast %cst_96 : f32 to vector<2x128xf32>
    %153 = arith.addf %151, %152 : vector<2x128xf32>
    %cst_97 = arith.constant 5.000000e-01 : f32
    %154 = vector.broadcast %cst_97 : f32 to vector<2x128xf32>
    %155 = arith.mulf %154, %146 : vector<2x128xf32>
    %156 = arith.select %140, %146, %155 : vector<2x128xi1>, vector<2x128xf32>
    %157 = math.tanh %156 : vector<2x128xf32>
    %cst_98 = arith.constant 5.000000e-01 : f32
    %158 = vector.broadcast %cst_98 : f32 to vector<2x128xf32>
    %159 = arith.mulf %158, %157 : vector<2x128xf32>
    %cst_99 = arith.constant 5.000000e-01 : f32
    %160 = vector.broadcast %cst_99 : f32 to vector<2x128xf32>
    %161 = arith.addf %159, %160 : vector<2x128xf32>
    %162 = arith.select %140, %157, %161 : vector<2x128xi1>, vector<2x128xf32>
    %163 = arith.mulf %153, %162 : vector<2x128xf32>
    %164 = arith.mulf %153, %142 : vector<2x128xf32>
    %165 = arith.select %140, %163, %164 : vector<2x128xi1>, vector<2x128xf32>
    %c64_i32_100 = arith.constant 64 : i32
    %166 = tpu.dynamic_rotate %165 by %c64_i32_100 dim 1 : vector<2x128xf32>, i32 -> vector<2x128xf32>
    %167 = arith.addf %165, %166 : vector<2x128xf32>
    %c64_i32_101 = arith.constant 64 : i32
    %168 = tpu.dynamic_rotate %162 by %c64_i32_101 dim 1 : vector<2x128xf32>, i32 -> vector<2x128xf32>
    %169 = arith.select %140, %168, %162 : vector<2x128xi1>, vector<2x128xf32>
    %170 = math.tanh %167 : vector<2x128xf32>
    %171 = arith.mulf %169, %170 : vector<2x128xf32>
    %cst_102 = arith.constant dense<0.000000e+00> : vector<2x256xf32>
    %172 = tpu.matmul %171, %137, %cst_102 {dimension_numbers = #tpu.dot_dimension_numbers<[1], [0], [0], [1], [0, 0, 1, 1], [], []>} : vector<2x128xf32>, vector<128x256xf32>, vector<2x256xf32> -> vector<2x256xf32>
    %173 = arith.addf %34, %172 : vector<2x256xf32>
    %174 = vector.extract_strided_slice %173 {offsets = [0, 0], sizes = [2, 128], strides = [1, 1]} : vector<2x256xf32> to vector<2x128xf32>
    %175 = vector.extract_strided_slice %173 {offsets = [0, 128], sizes = [2, 128], strides = [1, 1]} : vector<2x256xf32> to vector<2x128xf32>
    %cst_103 = arith.constant 5.000000e-01 : f32
    %176 = vector.broadcast %cst_103 : f32 to vector<2x128xf32>
    %177 = arith.mulf %176, %174 : vector<2x128xf32>
    %178 = math.tanh %177 : vector<2x128xf32>
    %cst_104 = arith.constant 5.000000e-01 : f32
    %179 = vector.broadcast %cst_104 : f32 to vector<2x128xf32>
    %180 = arith.mulf %179, %178 : vector<2x128xf32>
    %cst_105 = arith.constant 5.000000e-01 : f32
    %181 = vector.broadcast %cst_105 : f32 to vector<2x128xf32>
    %182 = arith.addf %180, %181 : vector<2x128xf32>
    %cst_106 = arith.constant 5.000000e-01 : f32
    %183 = vector.broadcast %cst_106 : f32 to vector<2x128xf32>
    %184 = arith.mulf %183, %175 : vector<2x128xf32>
    %185 = arith.select %140, %175, %184 : vector<2x128xi1>, vector<2x128xf32>
    %186 = math.tanh %185 : vector<2x128xf32>
    %cst_107 = arith.constant 5.000000e-01 : f32
    %187 = vector.broadcast %cst_107 : f32 to vector<2x128xf32>
    %188 = arith.mulf %187, %186 : vector<2x128xf32>
    %cst_108 = arith.constant 5.000000e-01 : f32
    %189 = vector.broadcast %cst_108 : f32 to vector<2x128xf32>
    %190 = arith.addf %188, %189 : vector<2x128xf32>
    %191 = arith.select %140, %186, %190 : vector<2x128xi1>, vector<2x128xf32>
    %192 = arith.mulf %182, %191 : vector<2x128xf32>
    %193 = arith.mulf %182, %167 : vector<2x128xf32>
    %194 = arith.select %140, %192, %193 : vector<2x128xi1>, vector<2x128xf32>
    %c64_i32_109 = arith.constant 64 : i32
    %195 = tpu.dynamic_rotate %194 by %c64_i32_109 dim 1 : vector<2x128xf32>, i32 -> vector<2x128xf32>
    %196 = arith.addf %194, %195 : vector<2x128xf32>
    %c64_i32_110 = arith.constant 64 : i32
    %197 = tpu.dynamic_rotate %191 by %c64_i32_110 dim 1 : vector<2x128xf32>, i32 -> vector<2x128xf32>
    %198 = arith.select %140, %197, %191 : vector<2x128xi1>, vector<2x128xf32>
    %199 = math.tanh %196 : vector<2x128xf32>
    %200 = arith.mulf %198, %199 : vector<2x128xf32>
    %cst_111 = arith.constant dense<0.000000e+00> : vector<2x256xf32>
    %201 = tpu.matmul %200, %137, %cst_111 {dimension_numbers = #tpu.dot_dimension_numbers<[1], [0], [0], [1], [0, 0, 1, 1], [], []>} : vector<2x128xf32>, vector<128x256xf32>, vector<2x256xf32> -> vector<2x256xf32>
    %202 = arith.addf %51, %201 : vector<2x256xf32>
    %203 = vector.extract_strided_slice %202 {offsets = [0, 0], sizes = [2, 128], strides = [1, 1]} : vector<2x256xf32> to vector<2x128xf32>
    %204 = vector.extract_strided_slice %202 {offsets = [0, 128], sizes = [2, 128], strides = [1, 1]} : vector<2x256xf32> to vector<2x128xf32>
    %cst_112 = arith.constant 5.000000e-01 : f32
    %205 = vector.broadcast %cst_112 : f32 to vector<2x128xf32>
    %206 = arith.mulf %205, %203 : vector<2x128xf32>
    %207 = math.tanh %206 : vector<2x128xf32>
    %cst_113 = arith.constant 5.000000e-01 : f32
    %208 = vector.broadcast %cst_113 : f32 to vector<2x128xf32>
    %209 = arith.mulf %208, %207 : vector<2x128xf32>
    %cst_114 = arith.constant 5.000000e-01 : f32
    %210 = vector.broadcast %cst_114 : f32 to vector<2x128xf32>
    %211 = arith.addf %209, %210 : vector<2x128xf32>
    %cst_115 = arith.constant 5.000000e-01 : f32
    %212 = vector.broadcast %cst_115 : f32 to vector<2x128xf32>
    %213 = arith.mulf %212, %204 : vector<2x128xf32>
    %214 = arith.select %140, %204, %213 : vector<2x128xi1>, vector<2x128xf32>
    %215 = math.tanh %214 : vector<2x128xf32>
    %cst_116 = arith.constant 5.000000e-01 : f32
    %216 = vector.broadcast %cst_116 : f32 to vector<2x128xf32>
    %217 = arith.mulf %216, %215 : vector<2x128xf32>
    %cst_117 = arith.constant 5.000000e-01 : f32
    %218 = vector.broadcast %cst_117 : f32 to vector<2x128xf32>
    %219 = arith.addf %217, %218 : vector<2x128xf32>
    %220 = arith.select %140, %215, %219 : vector<2x128xi1>, vector<2x128xf32>
    %221 = arith.mulf %211, %220 : vector<2x128xf32>
    %222 = arith.mulf %211, %196 : vector<2x128xf32>
    %223 = arith.select %140, %221, %222 : vector<2x128xi1>, vector<2x128xf32>
    %c64_i32_118 = arith.constant 64 : i32
    %224 = tpu.dynamic_rotate %223 by %c64_i32_118 dim 1 : vector<2x128xf32>, i32 -> vector<2x128xf32>
    %225 = arith.addf %223, %224 : vector<2x128xf32>
    %c64_i32_119 = arith.constant 64 : i32
    %226 = tpu.dynamic_rotate %220 by %c64_i32_119 dim 1 : vector<2x128xf32>, i32 -> vector<2x128xf32>
    %227 = arith.select %140, %226, %220 : vector<2x128xi1>, vector<2x128xf32>
    %228 = math.tanh %225 : vector<2x128xf32>
    %229 = arith.mulf %227, %228 : vector<2x128xf32>
    %cst_120 = arith.constant dense<0.000000e+00> : vector<2x256xf32>
    %230 = tpu.matmul %229, %137, %cst_120 {dimension_numbers = #tpu.dot_dimension_numbers<[1], [0], [0], [1], [0, 0, 1, 1], [], []>} : vector<2x128xf32>, vector<128x256xf32>, vector<2x256xf32> -> vector<2x256xf32>
    %231 = arith.addf %68, %230 : vector<2x256xf32>
    %232 = vector.extract_strided_slice %231 {offsets = [0, 0], sizes = [2, 128], strides = [1, 1]} : vector<2x256xf32> to vector<2x128xf32>
    %233 = vector.extract_strided_slice %231 {offsets = [0, 128], sizes = [2, 128], strides = [1, 1]} : vector<2x256xf32> to vector<2x128xf32>
    %cst_121 = arith.constant 5.000000e-01 : f32
    %234 = vector.broadcast %cst_121 : f32 to vector<2x128xf32>
    %235 = arith.mulf %234, %232 : vector<2x128xf32>
    %236 = math.tanh %235 : vector<2x128xf32>
    %cst_122 = arith.constant 5.000000e-01 : f32
    %237 = vector.broadcast %cst_122 : f32 to vector<2x128xf32>
    %238 = arith.mulf %237, %236 : vector<2x128xf32>
    %cst_123 = arith.constant 5.000000e-01 : f32
    %239 = vector.broadcast %cst_123 : f32 to vector<2x128xf32>
    %240 = arith.addf %238, %239 : vector<2x128xf32>
    %cst_124 = arith.constant 5.000000e-01 : f32
    %241 = vector.broadcast %cst_124 : f32 to vector<2x128xf32>
    %242 = arith.mulf %241, %233 : vector<2x128xf32>
    %243 = arith.select %140, %233, %242 : vector<2x128xi1>, vector<2x128xf32>
    %244 = math.tanh %243 : vector<2x128xf32>
    %cst_125 = arith.constant 5.000000e-01 : f32
    %245 = vector.broadcast %cst_125 : f32 to vector<2x128xf32>
    %246 = arith.mulf %245, %244 : vector<2x128xf32>
    %cst_126 = arith.constant 5.000000e-01 : f32
    %247 = vector.broadcast %cst_126 : f32 to vector<2x128xf32>
    %248 = arith.addf %246, %247 : vector<2x128xf32>
    %249 = arith.select %140, %244, %248 : vector<2x128xi1>, vector<2x128xf32>
    %250 = arith.mulf %240, %249 : vector<2x128xf32>
    %251 = arith.mulf %240, %225 : vector<2x128xf32>
    %252 = arith.select %140, %250, %251 : vector<2x128xi1>, vector<2x128xf32>
    %c64_i32_127 = arith.constant 64 : i32
    %253 = tpu.dynamic_rotate %252 by %c64_i32_127 dim 1 : vector<2x128xf32>, i32 -> vector<2x128xf32>
    %254 = arith.addf %252, %253 : vector<2x128xf32>
    %c64_i32_128 = arith.constant 64 : i32
    %255 = tpu.dynamic_rotate %249 by %c64_i32_128 dim 1 : vector<2x128xf32>, i32 -> vector<2x128xf32>
    %256 = arith.select %140, %255, %249 : vector<2x128xi1>, vector<2x128xf32>
    %257 = math.tanh %254 : vector<2x128xf32>
    %258 = arith.mulf %256, %257 : vector<2x128xf32>
    %cst_129 = arith.constant dense<0.000000e+00> : vector<2x256xf32>
    %259 = tpu.matmul %258, %137, %cst_129 {dimension_numbers = #tpu.dot_dimension_numbers<[1], [0], [0], [1], [0, 0, 1, 1], [], []>} : vector<2x128xf32>, vector<128x256xf32>, vector<2x256xf32> -> vector<2x256xf32>
    %260 = arith.addf %85, %259 : vector<2x256xf32>
    %261 = vector.extract_strided_slice %260 {offsets = [0, 0], sizes = [2, 128], strides = [1, 1]} : vector<2x256xf32> to vector<2x128xf32>
    %262 = vector.extract_strided_slice %260 {offsets = [0, 128], sizes = [2, 128], strides = [1, 1]} : vector<2x256xf32> to vector<2x128xf32>
    %cst_130 = arith.constant 5.000000e-01 : f32
    %263 = vector.broadcast %cst_130 : f32 to vector<2x128xf32>
    %264 = arith.mulf %263, %261 : vector<2x128xf32>
    %265 = math.tanh %264 : vector<2x128xf32>
    %cst_131 = arith.constant 5.000000e-01 : f32
    %266 = vector.broadcast %cst_131 : f32 to vector<2x128xf32>
    %267 = arith.mulf %266, %265 : vector<2x128xf32>
    %cst_132 = arith.constant 5.000000e-01 : f32
    %268 = vector.broadcast %cst_132 : f32 to vector<2x128xf32>
    %269 = arith.addf %267, %268 : vector<2x128xf32>
    %cst_133 = arith.constant 5.000000e-01 : f32
    %270 = vector.broadcast %cst_133 : f32 to vector<2x128xf32>
    %271 = arith.mulf %270, %262 : vector<2x128xf32>
    %272 = arith.select %140, %262, %271 : vector<2x128xi1>, vector<2x128xf32>
    %273 = math.tanh %272 : vector<2x128xf32>
    %cst_134 = arith.constant 5.000000e-01 : f32
    %274 = vector.broadcast %cst_134 : f32 to vector<2x128xf32>
    %275 = arith.mulf %274, %273 : vector<2x128xf32>
    %cst_135 = arith.constant 5.000000e-01 : f32
    %276 = vector.broadcast %cst_135 : f32 to vector<2x128xf32>
    %277 = arith.addf %275, %276 : vector<2x128xf32>
    %278 = arith.select %140, %273, %277 : vector<2x128xi1>, vector<2x128xf32>
    %279 = arith.mulf %269, %278 : vector<2x128xf32>
    %280 = arith.mulf %269, %254 : vector<2x128xf32>
    %281 = arith.select %140, %279, %280 : vector<2x128xi1>, vector<2x128xf32>
    %c64_i32_136 = arith.constant 64 : i32
    %282 = tpu.dynamic_rotate %281 by %c64_i32_136 dim 1 : vector<2x128xf32>, i32 -> vector<2x128xf32>
    %283 = arith.addf %281, %282 : vector<2x128xf32>
    %c64_i32_137 = arith.constant 64 : i32
    %284 = tpu.dynamic_rotate %278 by %c64_i32_137 dim 1 : vector<2x128xf32>, i32 -> vector<2x128xf32>
    %285 = arith.select %140, %284, %278 : vector<2x128xi1>, vector<2x128xf32>
    %286 = math.tanh %283 : vector<2x128xf32>
    %287 = arith.mulf %285, %286 : vector<2x128xf32>
    %cst_138 = arith.constant dense<0.000000e+00> : vector<2x256xf32>
    %288 = tpu.matmul %287, %137, %cst_138 {dimension_numbers = #tpu.dot_dimension_numbers<[1], [0], [0], [1], [0, 0, 1, 1], [], []>} : vector<2x128xf32>, vector<128x256xf32>, vector<2x256xf32> -> vector<2x256xf32>
    %289 = arith.addf %102, %288 : vector<2x256xf32>
    %290 = vector.extract_strided_slice %289 {offsets = [0, 0], sizes = [2, 128], strides = [1, 1]} : vector<2x256xf32> to vector<2x128xf32>
    %291 = vector.extract_strided_slice %289 {offsets = [0, 128], sizes = [2, 128], strides = [1, 1]} : vector<2x256xf32> to vector<2x128xf32>
    %cst_139 = arith.constant 5.000000e-01 : f32
    %292 = vector.broadcast %cst_139 : f32 to vector<2x128xf32>
    %293 = arith.mulf %292, %290 : vector<2x128xf32>
    %294 = math.tanh %293 : vector<2x128xf32>
    %cst_140 = arith.constant 5.000000e-01 : f32
    %295 = vector.broadcast %cst_140 : f32 to vector<2x128xf32>
    %296 = arith.mulf %295, %294 : vector<2x128xf32>
    %cst_141 = arith.constant 5.000000e-01 : f32
    %297 = vector.broadcast %cst_141 : f32 to vector<2x128xf32>
    %298 = arith.addf %296, %297 : vector<2x128xf32>
    %cst_142 = arith.constant 5.000000e-01 : f32
    %299 = vector.broadcast %cst_142 : f32 to vector<2x128xf32>
    %300 = arith.mulf %299, %291 : vector<2x128xf32>
    %301 = arith.select %140, %291, %300 : vector<2x128xi1>, vector<2x128xf32>
    %302 = math.tanh %301 : vector<2x128xf32>
    %cst_143 = arith.constant 5.000000e-01 : f32
    %303 = vector.broadcast %cst_143 : f32 to vector<2x128xf32>
    %304 = arith.mulf %303, %302 : vector<2x128xf32>
    %cst_144 = arith.constant 5.000000e-01 : f32
    %305 = vector.broadcast %cst_144 : f32 to vector<2x128xf32>
    %306 = arith.addf %304, %305 : vector<2x128xf32>
    %307 = arith.select %140, %302, %306 : vector<2x128xi1>, vector<2x128xf32>
    %308 = arith.mulf %298, %307 : vector<2x128xf32>
    %309 = arith.mulf %298, %283 : vector<2x128xf32>
    %310 = arith.select %140, %308, %309 : vector<2x128xi1>, vector<2x128xf32>
    %c64_i32_145 = arith.constant 64 : i32
    %311 = tpu.dynamic_rotate %310 by %c64_i32_145 dim 1 : vector<2x128xf32>, i32 -> vector<2x128xf32>
    %312 = arith.addf %310, %311 : vector<2x128xf32>
    %c64_i32_146 = arith.constant 64 : i32
    %313 = tpu.dynamic_rotate %307 by %c64_i32_146 dim 1 : vector<2x128xf32>, i32 -> vector<2x128xf32>
    %314 = arith.select %140, %313, %307 : vector<2x128xi1>, vector<2x128xf32>
    %315 = math.tanh %312 : vector<2x128xf32>
    %316 = arith.mulf %314, %315 : vector<2x128xf32>
    %cst_147 = arith.constant dense<0.000000e+00> : vector<2x256xf32>
    %317 = tpu.matmul %316, %137, %cst_147 {dimension_numbers = #tpu.dot_dimension_numbers<[1], [0], [0], [1], [0, 0, 1, 1], [], []>} : vector<2x128xf32>, vector<128x256xf32>, vector<2x256xf32> -> vector<2x256xf32>
    %318 = arith.addf %119, %317 : vector<2x256xf32>
    %319 = vector.extract_strided_slice %318 {offsets = [0, 0], sizes = [2, 128], strides = [1, 1]} : vector<2x256xf32> to vector<2x128xf32>
    %320 = vector.extract_strided_slice %318 {offsets = [0, 128], sizes = [2, 128], strides = [1, 1]} : vector<2x256xf32> to vector<2x128xf32>
    %cst_148 = arith.constant 5.000000e-01 : f32
    %321 = vector.broadcast %cst_148 : f32 to vector<2x128xf32>
    %322 = arith.mulf %321, %319 : vector<2x128xf32>
    %323 = math.tanh %322 : vector<2x128xf32>
    %cst_149 = arith.constant 5.000000e-01 : f32
    %324 = vector.broadcast %cst_149 : f32 to vector<2x128xf32>
    %325 = arith.mulf %324, %323 : vector<2x128xf32>
    %cst_150 = arith.constant 5.000000e-01 : f32
    %326 = vector.broadcast %cst_150 : f32 to vector<2x128xf32>
    %327 = arith.addf %325, %326 : vector<2x128xf32>
    %cst_151 = arith.constant 5.000000e-01 : f32
    %328 = vector.broadcast %cst_151 : f32 to vector<2x128xf32>
    %329 = arith.mulf %328, %320 : vector<2x128xf32>
    %330 = arith.select %140, %320, %329 : vector<2x128xi1>, vector<2x128xf32>
    %331 = math.tanh %330 : vector<2x128xf32>
    %cst_152 = arith.constant 5.000000e-01 : f32
    %332 = vector.broadcast %cst_152 : f32 to vector<2x128xf32>
    %333 = arith.mulf %332, %331 : vector<2x128xf32>
    %cst_153 = arith.constant 5.000000e-01 : f32
    %334 = vector.broadcast %cst_153 : f32 to vector<2x128xf32>
    %335 = arith.addf %333, %334 : vector<2x128xf32>
    %336 = arith.select %140, %331, %335 : vector<2x128xi1>, vector<2x128xf32>
    %337 = arith.mulf %327, %336 : vector<2x128xf32>
    %338 = arith.mulf %327, %312 : vector<2x128xf32>
    %339 = arith.select %140, %337, %338 : vector<2x128xi1>, vector<2x128xf32>
    %c64_i32_154 = arith.constant 64 : i32
    %340 = tpu.dynamic_rotate %339 by %c64_i32_154 dim 1 : vector<2x128xf32>, i32 -> vector<2x128xf32>
    %341 = arith.addf %339, %340 : vector<2x128xf32>
    %c64_i32_155 = arith.constant 64 : i32
    %342 = tpu.dynamic_rotate %336 by %c64_i32_155 dim 1 : vector<2x128xf32>, i32 -> vector<2x128xf32>
    %343 = arith.select %140, %342, %336 : vector<2x128xi1>, vector<2x128xf32>
    %344 = math.tanh %341 : vector<2x128xf32>
    %345 = arith.mulf %343, %344 : vector<2x128xf32>
    %cst_156 = arith.constant dense<0.000000e+00> : vector<2x256xf32>
    %346 = tpu.matmul %345, %137, %cst_156 {dimension_numbers = #tpu.dot_dimension_numbers<[1], [0], [0], [1], [0, 0, 1, 1], [], []>} : vector<2x128xf32>, vector<128x256xf32>, vector<2x256xf32> -> vector<2x256xf32>
    %347 = arith.addf %136, %346 : vector<2x256xf32>
    %348 = vector.extract_strided_slice %347 {offsets = [0, 0], sizes = [2, 128], strides = [1, 1]} : vector<2x256xf32> to vector<2x128xf32>
    %349 = vector.extract_strided_slice %347 {offsets = [0, 128], sizes = [2, 128], strides = [1, 1]} : vector<2x256xf32> to vector<2x128xf32>
    %cst_157 = arith.constant 5.000000e-01 : f32
    %350 = vector.broadcast %cst_157 : f32 to vector<2x128xf32>
    %351 = arith.mulf %350, %348 : vector<2x128xf32>
    %352 = math.tanh %351 : vector<2x128xf32>
    %cst_158 = arith.constant 5.000000e-01 : f32
    %353 = vector.broadcast %cst_158 : f32 to vector<2x128xf32>
    %354 = arith.mulf %353, %352 : vector<2x128xf32>
    %cst_159 = arith.constant 5.000000e-01 : f32
    %355 = vector.broadcast %cst_159 : f32 to vector<2x128xf32>
    %356 = arith.addf %354, %355 : vector<2x128xf32>
    %cst_160 = arith.constant 5.000000e-01 : f32
    %357 = vector.broadcast %cst_160 : f32 to vector<2x128xf32>
    %358 = arith.mulf %357, %349 : vector<2x128xf32>
    %359 = arith.select %140, %349, %358 : vector<2x128xi1>, vector<2x128xf32>
    %360 = math.tanh %359 : vector<2x128xf32>
    %cst_161 = arith.constant 5.000000e-01 : f32
    %361 = vector.broadcast %cst_161 : f32 to vector<2x128xf32>
    %362 = arith.mulf %361, %360 : vector<2x128xf32>
    %cst_162 = arith.constant 5.000000e-01 : f32
    %363 = vector.broadcast %cst_162 : f32 to vector<2x128xf32>
    %364 = arith.addf %362, %363 : vector<2x128xf32>
    %365 = arith.select %140, %360, %364 : vector<2x128xi1>, vector<2x128xf32>
    %366 = arith.mulf %356, %365 : vector<2x128xf32>
    %367 = arith.mulf %356, %341 : vector<2x128xf32>
    %368 = arith.select %140, %366, %367 : vector<2x128xi1>, vector<2x128xf32>
    %c64_i32_163 = arith.constant 64 : i32
    %369 = tpu.dynamic_rotate %368 by %c64_i32_163 dim 1 : vector<2x128xf32>, i32 -> vector<2x128xf32>
    %370 = arith.addf %368, %369 : vector<2x128xf32>
    %c64_i32_164 = arith.constant 64 : i32
    %371 = tpu.dynamic_rotate %365 by %c64_i32_164 dim 1 : vector<2x128xf32>, i32 -> vector<2x128xf32>
    %372 = arith.select %140, %371, %365 : vector<2x128xi1>, vector<2x128xf32>
    %373 = math.tanh %370 : vector<2x128xf32>
    %374 = arith.mulf %372, %373 : vector<2x128xf32>
    %c0_165 = arith.constant 0 : index
    %c0_166 = arith.constant 0 : index
    %375 = vector.load %arg6[%c0_165, %c0_166] : memref<128x32xf32, #tpu.memory_space<vmem>>, vector<128x32xf32>
    %cst_167 = arith.constant dense<0.000000e+00> : vector<2x32xf32>
    %376 = tpu.matmul %374, %375, %cst_167 {dimension_numbers = #tpu.dot_dimension_numbers<[1], [0], [0], [1], [0, 0, 1, 1], [], []>} : vector<2x128xf32>, vector<128x32xf32>, vector<2x32xf32> -> vector<2x32xf32>
    %c0_168 = arith.constant 0 : index
    %c0_169 = arith.constant 0 : index
    %377 = vector.load %arg7[%c0_168, %c0_169] : memref<1x32xf32, #tpu.memory_space<vmem>>, vector<1x32xf32>
    %378 = vector.broadcast %377 : vector<1x32xf32> to vector<2x32xf32>
    %379 = arith.addf %376, %378 : vector<2x32xf32>
    %cst_170 = arith.constant 0.000000e+00 : f32
    %380 = vector.broadcast %cst_170 : f32 to vector<2x32xf32>
    %381 = arith.maximumf %379, %380 : vector<2x32xf32>
    %c0_171 = arith.constant 0 : index
    %c0_172 = arith.constant 0 : index
    %382 = vector.load %arg8[%c0_171, %c0_172] : memref<32x3xf32, #tpu.memory_space<vmem>>, vector<32x3xf32>
    %cst_173 = arith.constant dense<0.000000e+00> : vector<2x3xf32>
    %383 = tpu.matmul %381, %382, %cst_173 {dimension_numbers = #tpu.dot_dimension_numbers<[1], [0], [0], [1], [0, 0, 1, 1], [], []>} : vector<2x32xf32>, vector<32x3xf32>, vector<2x3xf32> -> vector<2x3xf32>
    %c0_174 = arith.constant 0 : index
    %c0_175 = arith.constant 0 : index
    %384 = vector.load %arg9[%c0_174, %c0_175] : memref<1x3xf32, #tpu.memory_space<vmem>>, vector<1x3xf32>
    %385 = vector.broadcast %384 : vector<1x3xf32> to vector<2x3xf32>
    %386 = arith.addf %383, %385 : vector<2x3xf32>
    %c0_176 = arith.constant 0 : index
    %c0_177 = arith.constant 0 : index
    %387 = vector.load %arg10[%c0_176, %c0_177] : memref<2x3xf32, #tpu.memory_space<vmem>>, vector<2x3xf32>
    tpu.vector_store %arg10[%c0_176, %c0_177], %386 {strides = array<i32>} : memref<2x3xf32, #tpu.memory_space<vmem>>, vector<2x3xf32>,
    return
  }
}

</mosaic_0001>

<llo_original>
// kernel: forward.1
$region0: #{forward.1}
  #allocation0 [shape = 'u32[]', space=smem, size = 0x4, offset = 0x4, fixed_abs, tag = 'smem constant byte address 0x4 - core index']
  #allocation1 [shape = 'u32[144,128]{1,0:T(1,128)}', space=vmem, size = 0x12000, scoped, tag = 'internal scratch']
  %s0 = inlined_call_operand.vmem [shape: s32[2,8], index: 0, kind: input, shape index: {}]
  %s1 = inlined_call_operand.vmem [shape: s32[2,8], index: 1, kind: input, shape index: {}]
  %s2 = inlined_call_operand.vmem [shape: f32[50,256], index: 2, kind: input, shape index: {}]
  %s3 = inlined_call_operand.hbm [shape: f32[50,256], index: 3, kind: input, shape index: {}]
  %s4 = inlined_call_operand.vmem [shape: f32[1,256], index: 4, kind: input, shape index: {}]
  %s5 = inlined_call_operand.hbm [shape: f32[128,256], index: 5, kind: input, shape index: {}]
  %s6 = inlined_call_operand.vmem [shape: f32[128,32], index: 6, kind: input, shape index: {}]
  %s7 = inlined_call_operand.vmem [shape: f32[1,32], index: 7, kind: input, shape index: {}]
  %s8 = inlined_call_operand.vmem [shape: f32[32,3], index: 8, kind: input, shape index: {}]
  %s9 = inlined_call_operand.vmem [shape: f32[1,3], index: 9, kind: input, shape index: {}]
  %s10 = inlined_call_operand.hbm [shape: f32[2,3], index: 10, kind: output, shape index: {}]
  %s11 = sld [smem:[#allocation0]]
  $region66: #{forward.1} parent=0
    _
  %s13 = ssub.s32 1, %s11
  %s14 = scalar_select 0, %s13, %s11
  $region1: #{forward.1} parent=0
    #allocation2 [shape = 'u8[1024]{0}', space=smem, size = 0x400, scoped, tag = 'input window, operand 0, single buffered']
    #allocation3 [shape = 's32[1]{0}', space=sflag, size = 0x4, scoped, tag = 'scoped memory for forward.1']
    #allocation4 [shape = 's32[1]{0}', space=sflag, size = 0x4, scoped, tag = 'scoped memory for forward.1']
    #allocation5 [shape = 's32[1]{0}', space=sflag, size = 0x4, scoped, tag = 'scoped memory for forward.1']
    #allocation6 [shape = 'u8[1024]{0}', space=smem, size = 0x400, scoped, tag = 'input window, operand 1, single buffered']
    #allocation7 [shape = 's32[1]{0}', space=sflag, size = 0x4, scoped, tag = 'scoped memory for forward.1']
    #allocation8 [shape = 'u8[57344]{0}', space=vmem, size = 0xe000, scoped, tag = 'input window, operand 3, single buffered']
    #allocation9 [shape = 'u8[131072]{0}', space=vmem, size = 0x20000, scoped, tag = 'input window, operand 5, single buffered']
    #allocation10 [shape = 's32[1]{0}', space=sflag, size = 0x4, scoped, tag = 'scoped memory for forward.1']
    #allocation11 [shape = 'u8[1024]{0}', space=vmem, size = 0x400, scoped, tag = 'output window, operand 0, single buffered']
    %15 = vsyncpa [#allocation5], 0
    %16 = vsyncpa [#allocation7], 0
    %17 = vsyncpa [#allocation3], 0
    %18 = vsyncpa [#allocation10], 0
    %19 = vsyncpa [#allocation4], 0
    // Predicated region
    $region2: #{forward.1} parent=1 // pred_check
      _
    $region3: #{forward.1} parent=1 // pred_check_branch
      %21 = sbr.rel (0) target = $region5
    $region4: #{forward.1} parent=1 // pred_region
      %s23 = ssub.s32 32, 32
      %24 = vsyncadd [#allocation5], %s23
      %s26 = sshll.u32 %s0, 4
      %s27 = int_to_ptr.vmem [resolvable:$true] %s26
      %29 = dma.vmem_to_smem %s27, 32, [#allocation2], [#allocation5]
    $region5: #{forward.1} parent=1 // pred_fallthru
      _
    // Predicated region
    $region6: #{forward.1} parent=1 // pred_check
      _
    $region7: #{forward.1} parent=1 // pred_check_branch
      %31 = sbr.rel (0) target = $region9
    $region8: #{forward.1} parent=1 // pred_region
      %s33 = ssub.s32 32, 32
      %34 = vsyncadd [#allocation7], %s33
      %s36 = sshll.u32 %s1, 4
      %s37 = int_to_ptr.vmem [resolvable:$true] %s36
      %39 = dma.vmem_to_smem %s37, 32, [#allocation6], [#allocation7]
    $region9: #{forward.1} parent=1 // pred_fallthru
      _
    // Predicated region
    $region10: #{forward.1} parent=1 // pred_check
      _
    $region11: #{forward.1} parent=1 // pred_check_branch
      %41 = sbr.rel (0) target = $region13
    $region12: #{forward.1} parent=1 // pred_region
      _
    $region13: #{forward.1} parent=1 // pred_fallthru
      _
    // Predicated region
    $region14: #{forward.1} parent=1 // pred_check
      _
    $region15: #{forward.1} parent=1 // pred_check_branch
      %43 = sbr.rel (0) target = $region17
    $region16: #{forward.1} parent=1 // pred_region
      %s45 = ssub.s32 1792, 1792
      %46 = vsyncadd [#allocation3], %s45
      %s47 = sshll.u32 [#allocation8], 4
      %s48 = int_to_ptr.vmem [resolvable:$true] %s47
      %53 = dma.hbm_to_vmem [thread:$0]  %s3, 1792, %s48, [#allocation3], 256, 256, 16
    $region17: #{forward.1} parent=1 // pred_fallthru
      _
    // Predicated region
    $region18: #{forward.1} parent=1 // pred_check
      _
    $region19: #{forward.1} parent=1 // pred_check_branch
      %55 = sbr.rel (0) target = $region21
    $region20: #{forward.1} parent=1 // pred_region
      _
    $region21: #{forward.1} parent=1 // pred_fallthru
      _
    // Predicated region
    $region22: #{forward.1} parent=1 // pred_check
      _
    $region23: #{forward.1} parent=1 // pred_check_branch
      %57 = sbr.rel (0) target = $region25
    $region24: #{forward.1} parent=1 // pred_region
      %s59 = ssub.s32 4096, 4096
      %60 = vsyncadd [#allocation10], %s59
      %s61 = sshll.u32 [#allocation9], 4
      %s62 = int_to_ptr.vmem [resolvable:$true] %s61
      %67 = dma.hbm_to_vmem [thread:$0]  %s5, 4096, %s62, [#allocation10], 256, 256, 16
    $region25: #{forward.1} parent=1 // pred_fallthru
      _
    // Predicated region
    $region26: #{forward.1} parent=1 // pred_check
      _
    $region27: #{forward.1} parent=1 // pred_check_branch
      %69 = sbr.rel (0) target = $region29
    $region28: #{forward.1} parent=1 // pred_region
      _
    $region29: #{forward.1} parent=1 // pred_fallthru
      _
    // Predicated region
    $region30: #{forward.1} parent=1 // pred_check
      _
    $region31: #{forward.1} parent=1 // pred_check_branch
      %71 = sbr.rel (0) target = $region33
    $region32: #{forward.1} parent=1 // pred_region
      _
    $region33: #{forward.1} parent=1 // pred_fallthru
      _
    // Predicated region
    $region34: #{forward.1} parent=1 // pred_check
      _
    $region35: #{forward.1} parent=1 // pred_check_branch
      %73 = sbr.rel (0) target = $region37
    $region36: #{forward.1} parent=1 // pred_region
      _
    $region37: #{forward.1} parent=1 // pred_fallthru
      _
    // Predicated region
    $region38: #{forward.1} parent=1 // pred_check
      _
    $region39: #{forward.1} parent=1 // pred_check_branch
      %75 = sbr.rel (0) target = $region41
    $region40: #{forward.1} parent=1 // pred_region
      _
    $region41: #{forward.1} parent=1 // pred_fallthru
      _
    // Predicated region
    $region42: #{forward.1} parent=1 // pred_check
      _
    $region43: #{forward.1} parent=1 // pred_check_branch
      %77 = sbr.rel (0) target = $region45
    $region44: #{forward.1} parent=1 // pred_region
      %78 = dma.done [#allocation5], 32
    $region45: #{forward.1} parent=1 // pred_fallthru
      _
    // Predicated region
    $region46: #{forward.1} parent=1 // pred_check
      _
    $region47: #{forward.1} parent=1 // pred_check_branch
      %80 = sbr.rel (0) target = $region49
    $region48: #{forward.1} parent=1 // pred_region
      %81 = dma.done [#allocation7], 32
    $region49: #{forward.1} parent=1 // pred_fallthru
      _
    // Predicated region
    $region50: #{forward.1} parent=1 // pred_check
      _
    $region51: #{forward.1} parent=1 // pred_check_branch
      %83 = sbr.rel (0) target = $region53
    $region52: #{forward.1} parent=1 // pred_region
      %84 = dma.done [#allocation3], 1792
    $region53: #{forward.1} parent=1 // pred_fallthru
      _
    // Predicated region
    $region54: #{forward.1} parent=1 // pred_check
      _
    $region55: #{forward.1} parent=1 // pred_check_branch
      %86 = sbr.rel (0) target = $region57
    $region56: #{forward.1} parent=1 // pred_region
      %87 = dma.done [#allocation10], 4096
    $region57: #{forward.1} parent=1 // pred_fallthru
      _
    %88 = sfence
    %v89 = vld [vmem:[%s4] sm:$0x3]
    %s90 = sld [smem:[#allocation2]]
    %s91 = sld [smem:[#allocation6]]
    %s92 = sshra.s32 %s90, 3
    %s93 = sand.u32 %s90, 7
    %s94 = sshra.s32 %s90, 3
    %s95 = sand.u32 %s90, 7
    %s96 = smul.u32 %s92, 2
    %s97 = smul.u32 %s96, 8
    %s98 = sadd.s32 %s97, %s95
    %s99 = scalar_lea.vmem %s2, %s98
    %v100 = vld [vmem:[%s99] ss:$8 sm:$0x3]
    %s101 = sshra.s32 %s91, 3
    %s102 = sand.u32 %s91, 7
    %s103 = sshra.s32 %s91, 3
    %s104 = sand.u32 %s91, 7
    %s105 = smul.u32 %s101, 2
    %s106 = smul.u32 %s105, 8
    %s107 = sadd.s32 %s106, %s104
    %s108 = scalar_lea.vmem [#allocation8], %s107
    %v109 = vld [vmem:[%s108] ss:$8 sm:$0x3]
    %v110 = vadd.f32 %v100, %v109
    %s111 = sld [smem:[#allocation2 + $0x80]]
    %s112 = sld [smem:[#allocation6 + $0x80]]
    %s113 = sshra.s32 %s111, 3
    %s114 = sand.u32 %s111, 7
    %s115 = sshra.s32 %s111, 3
    %s116 = sand.u32 %s111, 7
    %s117 = smul.u32 %s113, 2
    %s118 = smul.u32 %s117, 8
    %s119 = sadd.s32 %s118, %s116
    %s120 = scalar_lea.vmem %s2, %s119
    %v121 = vld [vmem:[%s120] ss:$8 sm:$0x3]
    %s122 = sshra.s32 %s112, 3
    %s123 = sand.u32 %s112, 7
    %s124 = sshra.s32 %s112, 3
    %s125 = sand.u32 %s112, 7
    %s126 = smul.u32 %s122, 2
    %s127 = smul.u32 %s126, 8
    %s128 = sadd.s32 %s127, %s125
    %s129 = scalar_lea.vmem [#allocation8], %s128
    %v130 = vld [vmem:[%s129] ss:$8 sm:$0x3]
    %v131 = vadd.f32 %v121, %v130
    %v133 = vlaneseq
    %v134 = vshrl.u32 %v133, 7
    %v135 = vsub.s32 0, %v134
    %v136 = vrot.slane %v110, %v135
    %v137 = vlaneseq
    %v138 = vshrl.u32 %v137, 7
    %v139 = vsub.s32 1, %v138
    %v140 = vrot.slane %v110, %v139
    %v144 = vlaneseq
    %v145 = vshrl.u32 %v144, 7
    %v146 = vsub.s32 0, %v145
    %v147 = vrot.slane %v131, %v146
    %v148 = vlaneseq
    %v149 = vshrl.u32 %v148, 7
    %v150 = vsub.s32 1, %v149
    %v151 = vrot.slane %v131, %v150
    %vm154 = vcmask 1040384
    %v155 = vsel %vm154, %v136, %v147
    %v156 = vsel %vm154, %v140, %v151
    %v158 = vlaneseq
    %v159 = vshrl.u32 %v158, 7
    %v160 = vsub.s32 0, %v159
    %v161 = vrot.slane %v89, %v160
    %v162 = vlaneseq
    %v163 = vshrl.u32 %v162, 7
    %v164 = vsub.s32 1, %v163
    %v165 = vrot.slane %v89, %v164
    %v168 = vadd.f32 %v155, %v161
    %v169 = vadd.f32 %v156, %v165
    %s170 = sld [smem:[#allocation2 + $0x1]]
    %s171 = sld [smem:[#allocation6 + $0x1]]
    %s172 = sshra.s32 %s170, 3
    %s173 = sand.u32 %s170, 7
    %s174 = sshra.s32 %s170, 3
    %s175 = sand.u32 %s170, 7
    %s176 = smul.u32 %s172, 2
    %s177 = smul.u32 %s176, 8
    %s178 = sadd.s32 %s177, %s175
    %s179 = scalar_lea.vmem %s2, %s178
    %v180 = vld [vmem:[%s179] ss:$8 sm:$0x3]
    %s181 = sshra.s32 %s171, 3
    %s182 = sand.u32 %s171, 7
    %s183 = sshra.s32 %s171, 3
    %s184 = sand.u32 %s171, 7
    %s185 = smul.u32 %s181, 2
    %s186 = smul.u32 %s185, 8
    %s187 = sadd.s32 %s186, %s184
    %s188 = scalar_lea.vmem [#allocation8], %s187
    %v189 = vld [vmem:[%s188] ss:$8 sm:$0x3]
    %v190 = vadd.f32 %v180, %v189
    %s191 = sld [smem:[#allocation2 + $0x81]]
    %s192 = sld [smem:[#allocation6 + $0x81]]
    %s193 = sshra.s32 %s191, 3
    %s194 = sand.u32 %s191, 7
    %s195 = sshra.s32 %s191, 3
    %s196 = sand.u32 %s191, 7
    %s197 = smul.u32 %s193, 2
    %s198 = smul.u32 %s197, 8
    %s199 = sadd.s32 %s198, %s196
    %s200 = scalar_lea.vmem %s2, %s199
    %v201 = vld [vmem:[%s200] ss:$8 sm:$0x3]
    %s202 = sshra.s32 %s192, 3
    %s203 = sand.u32 %s192, 7
    %s204 = sshra.s32 %s192, 3
    %s205 = sand.u32 %s192, 7
    %s206 = smul.u32 %s202, 2
    %s207 = smul.u32 %s206, 8
    %s208 = sadd.s32 %s207, %s205
    %s209 = scalar_lea.vmem [#allocation8], %s208
    %v210 = vld [vmem:[%s209] ss:$8 sm:$0x3]
    %v211 = vadd.f32 %v201, %v210
    %v213 = vlaneseq
    %v214 = vshrl.u32 %v213, 7
    %v215 = vsub.s32 0, %v214
    %v216 = vrot.slane %v190, %v215
    %v217 = vlaneseq
    %v218 = vshrl.u32 %v217, 7
    %v219 = vsub.s32 1, %v218
    %v220 = vrot.slane %v190, %v219
    %v224 = vlaneseq
    %v225 = vshrl.u32 %v224, 7
    %v226 = vsub.s32 0, %v225
    %v227 = vrot.slane %v211, %v226
    %v228 = vlaneseq
    %v229 = vshrl.u32 %v228, 7
    %v230 = vsub.s32 1, %v229
    %v231 = vrot.slane %v211, %v230
    %v234 = vsel %vm154, %v216, %v227
    %v235 = vsel %vm154, %v220, %v231
    %v236 = vadd.f32 %v234, %v161
    %v237 = vadd.f32 %v235, %v165
    %s238 = sld [smem:[#allocation2 + $0x2]]
    %s239 = sld [smem:[#allocation6 + $0x2]]
    %s240 = sshra.s32 %s238, 3
    %s241 = sand.u32 %s238, 7
    %s242 = sshra.s32 %s238, 3
    %s243 = sand.u32 %s238, 7
    %s244 = smul.u32 %s240, 2
    %s245 = smul.u32 %s244, 8
    %s246 = sadd.s32 %s245, %s243
    %s247 = scalar_lea.vmem %s2, %s246
    %v248 = vld [vmem:[%s247] ss:$8 sm:$0x3]
    %s249 = sshra.s32 %s239, 3
    %s250 = sand.u32 %s239, 7
    %s251 = sshra.s32 %s239, 3
    %s252 = sand.u32 %s239, 7
    %s253 = smul.u32 %s249, 2
    %s254 = smul.u32 %s253, 8
    %s255 = sadd.s32 %s254, %s252
    %s256 = scalar_lea.vmem [#allocation8], %s255
    %v257 = vld [vmem:[%s256] ss:$8 sm:$0x3]
    %v258 = vadd.f32 %v248, %v257
    %s259 = sld [smem:[#allocation2 + $0x82]]
    %s260 = sld [smem:[#allocation6 + $0x82]]
    %s261 = sshra.s32 %s259, 3
    %s262 = sand.u32 %s259, 7
    %s263 = sshra.s32 %s259, 3
    %s264 = sand.u32 %s259, 7
    %s265 = smul.u32 %s261, 2
    %s266 = smul.u32 %s265, 8
    %s267 = sadd.s32 %s266, %s264
    %s268 = scalar_lea.vmem %s2, %s267
    %v269 = vld [vmem:[%s268] ss:$8 sm:$0x3]
    %s270 = sshra.s32 %s260, 3
    %s271 = sand.u32 %s260, 7
    %s272 = sshra.s32 %s260, 3
    %s273 = sand.u32 %s260, 7
    %s274 = smul.u32 %s270, 2
    %s275 = smul.u32 %s274, 8
    %s276 = sadd.s32 %s275, %s273
    %s277 = scalar_lea.vmem [#allocation8], %s276
    %v278 = vld [vmem:[%s277] ss:$8 sm:$0x3]
    %v279 = vadd.f32 %v269, %v278
    %v281 = vlaneseq
    %v282 = vshrl.u32 %v281, 7
    %v283 = vsub.s32 0, %v282
    %v284 = vrot.slane %v258, %v283
    %v285 = vlaneseq
    %v286 = vshrl.u32 %v285, 7
    %v287 = vsub.s32 1, %v286
    %v288 = vrot.slane %v258, %v287
    %v292 = vlaneseq
    %v293 = vshrl.u32 %v292, 7
    %v294 = vsub.s32 0, %v293
    %v295 = vrot.slane %v279, %v294
    %v296 = vlaneseq
    %v297 = vshrl.u32 %v296, 7
    %v298 = vsub.s32 1, %v297
    %v299 = vrot.slane %v279, %v298
    %v302 = vsel %vm154, %v284, %v295
    %v303 = vsel %vm154, %v288, %v299
    %v304 = vadd.f32 %v302, %v161
    %v305 = vadd.f32 %v303, %v165
    %s306 = sld [smem:[#allocation2 + $0x3]]
    %s307 = sld [smem:[#allocation6 + $0x3]]
    %s308 = sshra.s32 %s306, 3
    %s309 = sand.u32 %s306, 7
    %s310 = sshra.s32 %s306, 3
    %s311 = sand.u32 %s306, 7
    %s312 = smul.u32 %s308, 2
    %s313 = smul.u32 %s312, 8
    %s314 = sadd.s32 %s313, %s311
    %s315 = scalar_lea.vmem %s2, %s314
    %v316 = vld [vmem:[%s315] ss:$8 sm:$0x3]
    %s317 = sshra.s32 %s307, 3
    %s318 = sand.u32 %s307, 7
    %s319 = sshra.s32 %s307, 3
    %s320 = sand.u32 %s307, 7
    %s321 = smul.u32 %s317, 2
    %s322 = smul.u32 %s321, 8
    %s323 = sadd.s32 %s322, %s320
    %s324 = scalar_lea.vmem [#allocation8], %s323
    %v325 = vld [vmem:[%s324] ss:$8 sm:$0x3]
    %v326 = vadd.f32 %v316, %v325
    %s327 = sld [smem:[#allocation2 + $0x83]]
    %s328 = sld [smem:[#allocation6 + $0x83]]
    %s329 = sshra.s32 %s327, 3
    %s330 = sand.u32 %s327, 7
    %s331 = sshra.s32 %s327, 3
    %s332 = sand.u32 %s327, 7
    %s333 = smul.u32 %s329, 2
    %s334 = smul.u32 %s333, 8
    %s335 = sadd.s32 %s334, %s332
    %s336 = scalar_lea.vmem %s2, %s335
    %v337 = vld [vmem:[%s336] ss:$8 sm:$0x3]
    %s338 = sshra.s32 %s328, 3
    %s339 = sand.u32 %s328, 7
    %s340 = sshra.s32 %s328, 3
    %s341 = sand.u32 %s328, 7
    %s342 = smul.u32 %s338, 2
    %s343 = smul.u32 %s342, 8
    %s344 = sadd.s32 %s343, %s341
    %s345 = scalar_lea.vmem [#allocation8], %s344
    %v346 = vld [vmem:[%s345] ss:$8 sm:$0x3]
    %v347 = vadd.f32 %v337, %v346
    %v349 = vlaneseq
    %v350 = vshrl.u32 %v349, 7
    %v351 = vsub.s32 0, %v350
    %v352 = vrot.slane %v326, %v351
    %v353 = vlaneseq
    %v354 = vshrl.u32 %v353, 7
    %v355 = vsub.s32 1, %v354
    %v356 = vrot.slane %v326, %v355
    %v360 = vlaneseq
    %v361 = vshrl.u32 %v360, 7
    %v362 = vsub.s32 0, %v361
    %v363 = vrot.slane %v347, %v362
    %v364 = vlaneseq
    %v365 = vshrl.u32 %v364, 7
    %v366 = vsub.s32 1, %v365
    %v367 = vrot.slane %v347, %v366
    %v370 = vsel %vm154, %v352, %v363
    %v371 = vsel %vm154, %v356, %v367
    %v372 = vadd.f32 %v370, %v161
    %v373 = vadd.f32 %v371, %v165
    %s374 = sld [smem:[#allocation2 + $0x4]]
    %s375 = sld [smem:[#allocation6 + $0x4]]
    %s376 = sshra.s32 %s374, 3
    %s377 = sand.u32 %s374, 7
    %s378 = sshra.s32 %s374, 3
    %s379 = sand.u32 %s374, 7
    %s380 = smul.u32 %s376, 2
    %s381 = smul.u32 %s380, 8
    %s382 = sadd.s32 %s381, %s379
    %s383 = scalar_lea.vmem %s2, %s382
    %v384 = vld [vmem:[%s383] ss:$8 sm:$0x3]
    %s385 = sshra.s32 %s375, 3
    %s386 = sand.u32 %s375, 7
    %s387 = sshra.s32 %s375, 3
    %s388 = sand.u32 %s375, 7
    %s389 = smul.u32 %s385, 2
    %s390 = smul.u32 %s389, 8
    %s391 = sadd.s32 %s390, %s388
    %s392 = scalar_lea.vmem [#allocation8], %s391
    %v393 = vld [vmem:[%s392] ss:$8 sm:$0x3]
    %v394 = vadd.f32 %v384, %v393
    %s395 = sld [smem:[#allocation2 + $0x84]]
    %s396 = sld [smem:[#allocation6 + $0x84]]
    %s397 = sshra.s32 %s395, 3
    %s398 = sand.u32 %s395, 7
    %s399 = sshra.s32 %s395, 3
    %s400 = sand.u32 %s395, 7
    %s401 = smul.u32 %s397, 2
    %s402 = smul.u32 %s401, 8
    %s403 = sadd.s32 %s402, %s400
    %s404 = scalar_lea.vmem %s2, %s403
    %v405 = vld [vmem:[%s404] ss:$8 sm:$0x3]
    %s406 = sshra.s32 %s396, 3
    %s407 = sand.u32 %s396, 7
    %s408 = sshra.s32 %s396, 3
    %s409 = sand.u32 %s396, 7
    %s410 = smul.u32 %s406, 2
    %s411 = smul.u32 %s410, 8
    %s412 = sadd.s32 %s411, %s409
    %s413 = scalar_lea.vmem [#allocation8], %s412
    %v414 = vld [vmem:[%s413] ss:$8 sm:$0x3]
    %v415 = vadd.f32 %v405, %v414
    %v417 = vlaneseq
    %v418 = vshrl.u32 %v417, 7
    %v419 = vsub.s32 0, %v418
    %v420 = vrot.slane %v394, %v419
    %v421 = vlaneseq
    %v422 = vshrl.u32 %v421, 7
    %v423 = vsub.s32 1, %v422
    %v424 = vrot.slane %v394, %v423
    %v428 = vlaneseq
    %v429 = vshrl.u32 %v428, 7
    %v430 = vsub.s32 0, %v429
    %v431 = vrot.slane %v415, %v430
    %v432 = vlaneseq
    %v433 = vshrl.u32 %v432, 7
    %v434 = vsub.s32 1, %v433
    %v435 = vrot.slane %v415, %v434
    %v438 = vsel %vm154, %v420, %v431
    %v439 = vsel %vm154, %v424, %v435
    %v440 = vadd.f32 %v438, %v161
    %v441 = vadd.f32 %v439, %v165
    %s442 = sld [smem:[#allocation2 + $0x5]]
    %s443 = sld [smem:[#allocation6 + $0x5]]
    %s444 = sshra.s32 %s442, 3
    %s445 = sand.u32 %s442, 7
    %s446 = sshra.s32 %s442, 3
    %s447 = sand.u32 %s442, 7
    %s448 = smul.u32 %s444, 2
    %s449 = smul.u32 %s448, 8
    %s450 = sadd.s32 %s449, %s447
    %s451 = scalar_lea.vmem %s2, %s450
    %v452 = vld [vmem:[%s451] ss:$8 sm:$0x3]
    %s453 = sshra.s32 %s443, 3
    %s454 = sand.u32 %s443, 7
    %s455 = sshra.s32 %s443, 3
    %s456 = sand.u32 %s443, 7
    %s457 = smul.u32 %s453, 2
    %s458 = smul.u32 %s457, 8
    %s459 = sadd.s32 %s458, %s456
    %s460 = scalar_lea.vmem [#allocation8], %s459
    %v461 = vld [vmem:[%s460] ss:$8 sm:$0x3]
    %v462 = vadd.f32 %v452, %v461
    %s463 = sld [smem:[#allocation2 + $0x85]]
    %s464 = sld [smem:[#allocation6 + $0x85]]
    %s465 = sshra.s32 %s463, 3
    %s466 = sand.u32 %s463, 7
    %s467 = sshra.s32 %s463, 3
    %s468 = sand.u32 %s463, 7
    %s469 = smul.u32 %s465, 2
    %s470 = smul.u32 %s469, 8
    %s471 = sadd.s32 %s470, %s468
    %s472 = scalar_lea.vmem %s2, %s471
    %v473 = vld [vmem:[%s472] ss:$8 sm:$0x3]
    %s474 = sshra.s32 %s464, 3
    %s475 = sand.u32 %s464, 7
    %s476 = sshra.s32 %s464, 3
    %s477 = sand.u32 %s464, 7
    %s478 = smul.u32 %s474, 2
    %s479 = smul.u32 %s478, 8
    %s480 = sadd.s32 %s479, %s477
    %s481 = scalar_lea.vmem [#allocation8], %s480
    %v482 = vld [vmem:[%s481] ss:$8 sm:$0x3]
    %v483 = vadd.f32 %v473, %v482
    %v485 = vlaneseq
    %v486 = vshrl.u32 %v485, 7
    %v487 = vsub.s32 0, %v486
    %v488 = vrot.slane %v462, %v487
    %v489 = vlaneseq
    %v490 = vshrl.u32 %v489, 7
    %v491 = vsub.s32 1, %v490
    %v492 = vrot.slane %v462, %v491
    %v496 = vlaneseq
    %v497 = vshrl.u32 %v496, 7
    %v498 = vsub.s32 0, %v497
    %v499 = vrot.slane %v483, %v498
    %v500 = vlaneseq
    %v501 = vshrl.u32 %v500, 7
    %v502 = vsub.s32 1, %v501
    %v503 = vrot.slane %v483, %v502
    %v506 = vsel %vm154, %v488, %v499
    %v507 = vsel %vm154, %v492, %v503
    %v508 = vadd.f32 %v506, %v161
    %v509 = vadd.f32 %v507, %v165
    %s510 = sld [smem:[#allocation2 + $0x6]]
    %s511 = sld [smem:[#allocation6 + $0x6]]
    %s512 = sshra.s32 %s510, 3
    %s513 = sand.u32 %s510, 7
    %s514 = sshra.s32 %s510, 3
    %s515 = sand.u32 %s510, 7
    %s516 = smul.u32 %s512, 2
    %s517 = smul.u32 %s516, 8
    %s518 = sadd.s32 %s517, %s515
    %s519 = scalar_lea.vmem %s2, %s518
    %v520 = vld [vmem:[%s519] ss:$8 sm:$0x3]
    %s521 = sshra.s32 %s511, 3
    %s522 = sand.u32 %s511, 7
    %s523 = sshra.s32 %s511, 3
    %s524 = sand.u32 %s511, 7
    %s525 = smul.u32 %s521, 2
    %s526 = smul.u32 %s525, 8
    %s527 = sadd.s32 %s526, %s524
    %s528 = scalar_lea.vmem [#allocation8], %s527
    %v529 = vld [vmem:[%s528] ss:$8 sm:$0x3]
    %v530 = vadd.f32 %v520, %v529
    %s531 = sld [smem:[#allocation2 + $0x86]]
    %s532 = sld [smem:[#allocation6 + $0x86]]
    %s533 = sshra.s32 %s531, 3
    %s534 = sand.u32 %s531, 7
    %s535 = sshra.s32 %s531, 3
    %s536 = sand.u32 %s531, 7
    %s537 = smul.u32 %s533, 2
    %s538 = smul.u32 %s537, 8
    %s539 = sadd.s32 %s538, %s536
    %s540 = scalar_lea.vmem %s2, %s539
    %v541 = vld [vmem:[%s540] ss:$8 sm:$0x3]
    %s542 = sshra.s32 %s532, 3
    %s543 = sand.u32 %s532, 7
    %s544 = sshra.s32 %s532, 3
    %s545 = sand.u32 %s532, 7
    %s546 = smul.u32 %s542, 2
    %s547 = smul.u32 %s546, 8
    %s548 = sadd.s32 %s547, %s545
    %s549 = scalar_lea.vmem [#allocation8], %s548
    %v550 = vld [vmem:[%s549] ss:$8 sm:$0x3]
    %v551 = vadd.f32 %v541, %v550
    %v553 = vlaneseq
    %v554 = vshrl.u32 %v553, 7
    %v555 = vsub.s32 0, %v554
    %v556 = vrot.slane %v530, %v555
    %v557 = vlaneseq
    %v558 = vshrl.u32 %v557, 7
    %v559 = vsub.s32 1, %v558
    %v560 = vrot.slane %v530, %v559
    %v564 = vlaneseq
    %v565 = vshrl.u32 %v564, 7
    %v566 = vsub.s32 0, %v565
    %v567 = vrot.slane %v551, %v566
    %v568 = vlaneseq
    %v569 = vshrl.u32 %v568, 7
    %v570 = vsub.s32 1, %v569
    %v571 = vrot.slane %v551, %v570
    %v574 = vsel %vm154, %v556, %v567
    %v575 = vsel %vm154, %v560, %v571
    %v576 = vadd.f32 %v574, %v161
    %v577 = vadd.f32 %v575, %v165
    %s578 = sld [smem:[#allocation2 + $0x7]]
    %s579 = sld [smem:[#allocation6 + $0x7]]
    %s580 = sshra.s32 %s578, 3
    %s581 = sand.u32 %s578, 7
    %s582 = sshra.s32 %s578, 3
    %s583 = sand.u32 %s578, 7
    %s584 = smul.u32 %s580, 2
    %s585 = smul.u32 %s584, 8
    %s586 = sadd.s32 %s585, %s583
    %s587 = scalar_lea.vmem %s2, %s586
    %v588 = vld [vmem:[%s587] ss:$8 sm:$0x3]
    %s589 = sshra.s32 %s579, 3
    %s590 = sand.u32 %s579, 7
    %s591 = sshra.s32 %s579, 3
    %s592 = sand.u32 %s579, 7
    %s593 = smul.u32 %s589, 2
    %s594 = smul.u32 %s593, 8
    %s595 = sadd.s32 %s594, %s592
    %s596 = scalar_lea.vmem [#allocation8], %s595
    %v597 = vld [vmem:[%s596] ss:$8 sm:$0x3]
    %v598 = vadd.f32 %v588, %v597
    %s599 = sld [smem:[#allocation2 + $0x87]]
    %s600 = sld [smem:[#allocation6 + $0x87]]
    %s601 = sshra.s32 %s599, 3
    %s602 = sand.u32 %s599, 7
    %s603 = sshra.s32 %s599, 3
    %s604 = sand.u32 %s599, 7
    %s605 = smul.u32 %s601, 2
    %s606 = smul.u32 %s605, 8
    %s607 = sadd.s32 %s606, %s604
    %s608 = scalar_lea.vmem %s2, %s607
    %v609 = vld [vmem:[%s608] ss:$8 sm:$0x3]
    %s610 = sshra.s32 %s600, 3
    %s611 = sand.u32 %s600, 7
    %s612 = sshra.s32 %s600, 3
    %s613 = sand.u32 %s600, 7
    %s614 = smul.u32 %s610, 2
    %s615 = smul.u32 %s614, 8
    %s616 = sadd.s32 %s615, %s613
    %s617 = scalar_lea.vmem [#allocation8], %s616
    %v618 = vld [vmem:[%s617] ss:$8 sm:$0x3]
    %v619 = vadd.f32 %v609, %v618
    %v621 = vlaneseq
    %v622 = vshrl.u32 %v621, 7
    %v623 = vsub.s32 0, %v622
    %v624 = vrot.slane %v598, %v623
    %v625 = vlaneseq
    %v626 = vshrl.u32 %v625, 7
    %v627 = vsub.s32 1, %v626
    %v628 = vrot.slane %v598, %v627
    %v632 = vlaneseq
    %v633 = vshrl.u32 %v632, 7
    %v634 = vsub.s32 0, %v633
    %v635 = vrot.slane %v619, %v634
    %v636 = vlaneseq
    %v637 = vshrl.u32 %v636, 7
    %v638 = vsub.s32 1, %v637
    %v639 = vrot.slane %v619, %v638
    %v642 = vsel %vm154, %v624, %v635
    %v643 = vsel %vm154, %v628, %v639
    %v644 = vadd.f32 %v642, %v161
    %v645 = vadd.f32 %v643, %v165
    %v646 = vld [vmem:[#allocation9] sm:$0xff]
    %v647 = vld [vmem:[#allocation9 + $0x8] sm:$0xff]
    %v648 = vld [vmem:[#allocation9 + $0x10] sm:$0xff]
    %v649 = vld [vmem:[#allocation9 + $0x18] sm:$0xff]
    %v650 = vld [vmem:[#allocation9 + $0x20] sm:$0xff]
    %v651 = vld [vmem:[#allocation9 + $0x28] sm:$0xff]
    %v652 = vld [vmem:[#allocation9 + $0x30] sm:$0xff]
    %v653 = vld [vmem:[#allocation9 + $0x38] sm:$0xff]
    %v654 = vld [vmem:[#allocation9 + $0x40] sm:$0xff]
    %v655 = vld [vmem:[#allocation9 + $0x48] sm:$0xff]
    %v656 = vld [vmem:[#allocation9 + $0x50] sm:$0xff]
    %v657 = vld [vmem:[#allocation9 + $0x58] sm:$0xff]
    %v658 = vld [vmem:[#allocation9 + $0x60] sm:$0xff]
    %v659 = vld [vmem:[#allocation9 + $0x68] sm:$0xff]
    %v660 = vld [vmem:[#allocation9 + $0x70] sm:$0xff]
    %v661 = vld [vmem:[#allocation9 + $0x78] sm:$0xff]
    %v662 = vld [vmem:[#allocation9 + $0x80] sm:$0xff]
    %v663 = vld [vmem:[#allocation9 + $0x88] sm:$0xff]
    %v664 = vld [vmem:[#allocation9 + $0x90] sm:$0xff]
    %v665 = vld [vmem:[#allocation9 + $0x98] sm:$0xff]
    %v666 = vld [vmem:[#allocation9 + $0xa0] sm:$0xff]
    %v667 = vld [vmem:[#allocation9 + $0xa8] sm:$0xff]
    %v668 = vld [vmem:[#allocation9 + $0xb0] sm:$0xff]
    %v669 = vld [vmem:[#allocation9 + $0xb8] sm:$0xff]
    %v670 = vld [vmem:[#allocation9 + $0xc0] sm:$0xff]
    %v671 = vld [vmem:[#allocation9 + $0xc8] sm:$0xff]
    %v672 = vld [vmem:[#allocation9 + $0xd0] sm:$0xff]
    %v673 = vld [vmem:[#allocation9 + $0xd8] sm:$0xff]
    %v674 = vld [vmem:[#allocation9 + $0xe0] sm:$0xff]
    %v675 = vld [vmem:[#allocation9 + $0xe8] sm:$0xff]
    %v676 = vld [vmem:[#allocation9 + $0xf0] sm:$0xff]
    %v677 = vld [vmem:[#allocation9 + $0xf8] sm:$0xff]
    %v678 = vlaneseq
    %v679 = vand.u32 %v678, 127
    %vm680 = vcmp.lt.s32.totalorder %v679, 64
    %681 = vmatprep.subr.mxu0 %v647
    %682 = vmatpush1.msra.mxu0 %v646
    %683 = vmatprep.subr.mxu0 %v649
    %684 = vmatpush1.msra.mxu0 %v648
    %685 = vmatprep.subr.mxu0 %v651
    %686 = vmatpush1.msra.mxu0 %v650
    %687 = vmatprep.subr.mxu0 %v653
    %688 = vmatpush1.msra.mxu0 %v652
    %689 = vmatprep.subr.mxu0 %v655
    %690 = vmatpush1.msra.mxu0 %v654
    %691 = vmatprep.subr.mxu0 %v657
    %692 = vmatpush1.msra.mxu0 %v656
    %693 = vmatprep.subr.mxu0 %v659
    %694 = vmatpush1.msra.mxu0 %v658
    %695 = vmatprep.subr.mxu0 %v661
    %696 = vmatpush1.msra.mxu0 %v660
    %697 = vmatprep.subr.mxu0 %v663
    %698 = vmatpush1.msra.mxu0 %v662
    %699 = vmatprep.subr.mxu0 %v665
    %700 = vmatpush1.msra.mxu0 %v664
    %701 = vmatprep.subr.mxu0 %v667
    %702 = vmatpush1.msra.mxu0 %v666
    %703 = vmatprep.subr.mxu0 %v669
    %704 = vmatpush1.msra.mxu0 %v668
    %705 = vmatprep.subr.mxu0 %v671
    %706 = vmatpush1.msra.mxu0 %v670
    %707 = vmatprep.subr.mxu0 %v673
    %708 = vmatpush1.msra.mxu0 %v672
    %709 = vmatprep.subr.mxu0 %v675
    %710 = vmatpush1.msra.mxu0 %v674
    %711 = vmatprep.subr.mxu0 %v677
    %712 = vmatpush1.msra.mxu0 %v676
    %713 = vmatprep.subr.mxu0 0.0
    %714 = vmatpush1.msra.mxu0 0.0
    %715 = vmatprep.subr.mxu0 0.0
    %716 = vmatpush1.msra.mxu0 0.0
    %717 = vmatprep.subr.mxu0 0.0
    %718 = vmatpush1.msra.mxu0 0.0
    %719 = vmatprep.subr.mxu0 0.0
    %720 = vmatpush1.msra.mxu0 0.0
    %721 = vmatprep.subr.mxu0 0.0
    %722 = vmatpush1.msra.mxu0 0.0
    %723 = vmatprep.subr.mxu0 0.0
    %724 = vmatpush1.msra.mxu0 0.0
    %725 = vmatprep.subr.mxu0 0.0
    %726 = vmatpush1.msra.mxu0 0.0
    %727 = vmatprep.subr.mxu0 0.0
    %728 = vmatpush1.msra.mxu0 0.0
    %729 = vmatprep.subr.mxu0 0.0
    %730 = vmatpush1.msra.mxu0 0.0
    %731 = vmatprep.subr.mxu0 0.0
    %732 = vmatpush1.msra.mxu0 0.0
    %733 = vmatprep.subr.mxu0 0.0
    %734 = vmatpush1.msra.mxu0 0.0
    %735 = vmatprep.subr.mxu0 0.0
    %736 = vmatpush1.msra.mxu0 0.0
    %737 = vmatprep.subr.mxu0 0.0
    %738 = vmatpush1.msra.mxu0 0.0
    %739 = vmatprep.subr.mxu0 0.0
    %740 = vmatpush1.msra.mxu0 0.0
    %741 = vmatprep.subr.mxu0 0.0
    %742 = vmatpush1.msra.mxu0 0.0
    %743 = vmatprep.subr.mxu0 0.0
    %744 = vmatpush1.msra.mxu0 0.0
    %745 = vmatprep.mubr.f32.mxu0 0.0
    %746 = vmatmul.mubr.f32.gmra.mrb[0].mxu0 0.0
    %v747 = vpop.f32.mrb[0].mxu0
    %v748 = vadd.f32 0.0, %v747
    %v749 = vpop.f32.mrb[0].mxu0
    %v750 = vadd.f32 0.0, %v749
    %751 = vdwg.mxu0
    %v752 = vadd.f32 %v168, %v748
    %v753 = vadd.f32 %v169, %v750
    %v754 = vmul.f32 %v752, 0.5
    %v755 = vtanh.pop %v754
    %v756 = vmul.f32 %v755, 0.5
    %v757 = vadd.f32 %v756, 0.5
    %v758 = vmul.f32 %v753, 0.5
    %v759 = vsel %vm680, %v753, %v758
    %v760 = vtanh.pop %v759
    %v761 = vmul.f32 %v760, 0.5
    %v762 = vadd.f32 %v761, 0.5
    %v763 = vsel %vm680, %v760, %v762
    %v764 = vmul.f32 %v757, %v763
    %v765 = vmul.f32 %v757, 0.0
    %v766 = vsel %vm680, %v764, %v765
    %767 = vrot.lane.b32.xlu0 %v766, 64
    %v768 = vpop.permute.xlu0 %767
    %v769 = vadd.f32 %v766, %v768
    %770 = vrot.lane.b32.xlu0 %v763, 64
    %v771 = vpop.permute.xlu0 %770
    %v772 = vsel %vm680, %v771, %v762
    %v773 = vtanh.pop %v769
    %v774 = vmul.f32 %v772, %v773
    %775 = vmatprep.subr.mxu0 %v647
    %776 = vmatpush1.msra.mxu0 %v646
    %777 = vmatprep.subr.mxu0 %v649
    %778 = vmatpush1.msra.mxu0 %v648
    %779 = vmatprep.subr.mxu0 %v651
    %780 = vmatpush1.msra.mxu0 %v650
    %781 = vmatprep.subr.mxu0 %v653
    %782 = vmatpush1.msra.mxu0 %v652
    %783 = vmatprep.subr.mxu0 %v655
    %784 = vmatpush1.msra.mxu0 %v654
    %785 = vmatprep.subr.mxu0 %v657
    %786 = vmatpush1.msra.mxu0 %v656
    %787 = vmatprep.subr.mxu0 %v659
    %788 = vmatpush1.msra.mxu0 %v658
    %789 = vmatprep.subr.mxu0 %v661
    %790 = vmatpush1.msra.mxu0 %v660
    %791 = vmatprep.subr.mxu0 %v663
    %792 = vmatpush1.msra.mxu0 %v662
    %793 = vmatprep.subr.mxu0 %v665
    %794 = vmatpush1.msra.mxu0 %v664
    %795 = vmatprep.subr.mxu0 %v667
    %796 = vmatpush1.msra.mxu0 %v666
    %797 = vmatprep.subr.mxu0 %v669
    %798 = vmatpush1.msra.mxu0 %v668
    %799 = vmatprep.subr.mxu0 %v671
    %800 = vmatpush1.msra.mxu0 %v670
    %801 = vmatprep.subr.mxu0 %v673
    %802 = vmatpush1.msra.mxu0 %v672
    %803 = vmatprep.subr.mxu0 %v675
    %804 = vmatpush1.msra.mxu0 %v674
    %805 = vmatprep.subr.mxu0 %v677
    %806 = vmatpush1.msra.mxu0 %v676
    %807 = vmatprep.subr.mxu0 0.0
    %808 = vmatpush1.msra.mxu0 0.0
    %809 = vmatprep.subr.mxu0 0.0
    %810 = vmatpush1.msra.mxu0 0.0
    %811 = vmatprep.subr.mxu0 0.0
    %812 = vmatpush1.msra.mxu0 0.0
    %813 = vmatprep.subr.mxu0 0.0
    %814 = vmatpush1.msra.mxu0 0.0
    %815 = vmatprep.subr.mxu0 0.0
    %816 = vmatpush1.msra.mxu0 0.0
    %817 = vmatprep.subr.mxu0 0.0
    %818 = vmatpush1.msra.mxu0 0.0
    %819 = vmatprep.subr.mxu0 0.0
    %820 = vmatpush1.msra.mxu0 0.0
    %821 = vmatprep.subr.mxu0 0.0
    %822 = vmatpush1.msra.mxu0 0.0
    %823 = vmatprep.subr.mxu0 0.0
    %824 = vmatpush1.msra.mxu0 0.0
    %825 = vmatprep.subr.mxu0 0.0
    %826 = vmatpush1.msra.mxu0 0.0
    %827 = vmatprep.subr.mxu0 0.0
    %828 = vmatpush1.msra.mxu0 0.0
    %829 = vmatprep.subr.mxu0 0.0
    %830 = vmatpush1.msra.mxu0 0.0
    %831 = vmatprep.subr.mxu0 0.0
    %832 = vmatpush1.msra.mxu0 0.0
    %833 = vmatprep.subr.mxu0 0.0
    %834 = vmatpush1.msra.mxu0 0.0
    %835 = vmatprep.subr.mxu0 0.0
    %836 = vmatpush1.msra.mxu0 0.0
    %837 = vmatprep.subr.mxu0 0.0
    %838 = vmatpush1.msra.mxu0 0.0
    %839 = vmatprep.mubr.f32.mxu0 0.0
    %840 = vmatmul.mubr.f32.gmra.mrb[0].mxu0 %v774
    %v841 = vpop.f32.mrb[0].mxu0
    %v842 = vadd.f32 0.0, %v841
    %v843 = vpop.f32.mrb[0].mxu0
    %v844 = vadd.f32 0.0, %v843
    %845 = vdwg.mxu0
    %v846 = vadd.f32 %v236, %v842
    %v847 = vadd.f32 %v237, %v844
    %v848 = vmul.f32 %v846, 0.5
    %v849 = vtanh.pop %v848
    %v850 = vmul.f32 %v849, 0.5
    %v851 = vadd.f32 %v850, 0.5
    %v852 = vmul.f32 %v847, 0.5
    %v853 = vsel %vm680, %v847, %v852
    %v854 = vtanh.pop %v853
    %v855 = vmul.f32 %v854, 0.5
    %v856 = vadd.f32 %v855, 0.5
    %v857 = vsel %vm680, %v854, %v856
    %v858 = vmul.f32 %v851, %v857
    %v859 = vmul.f32 %v851, %v769
    %v860 = vsel %vm680, %v858, %v859
    %861 = vrot.lane.b32.xlu0 %v860, 64
    %v862 = vpop.permute.xlu0 %861
    %v863 = vadd.f32 %v860, %v862
    %864 = vrot.lane.b32.xlu0 %v857, 64
    %v865 = vpop.permute.xlu0 %864
    %v866 = vsel %vm680, %v865, %v856
    %v867 = vtanh.pop %v863
    %v868 = vmul.f32 %v866, %v867
    %869 = vmatprep.subr.mxu0 %v647
    %870 = vmatpush1.msra.mxu0 %v646
    %871 = vmatprep.subr.mxu0 %v649
    %872 = vmatpush1.msra.mxu0 %v648
    %873 = vmatprep.subr.mxu0 %v651
    %874 = vmatpush1.msra.mxu0 %v650
    %875 = vmatprep.subr.mxu0 %v653
    %876 = vmatpush1.msra.mxu0 %v652
    %877 = vmatprep.subr.mxu0 %v655
    %878 = vmatpush1.msra.mxu0 %v654
    %879 = vmatprep.subr.mxu0 %v657
    %880 = vmatpush1.msra.mxu0 %v656
    %881 = vmatprep.subr.mxu0 %v659
    %882 = vmatpush1.msra.mxu0 %v658
    %883 = vmatprep.subr.mxu0 %v661
    %884 = vmatpush1.msra.mxu0 %v660
    %885 = vmatprep.subr.mxu0 %v663
    %886 = vmatpush1.msra.mxu0 %v662
    %887 = vmatprep.subr.mxu0 %v665
    %888 = vmatpush1.msra.mxu0 %v664
    %889 = vmatprep.subr.mxu0 %v667
    %890 = vmatpush1.msra.mxu0 %v666
    %891 = vmatprep.subr.mxu0 %v669
    %892 = vmatpush1.msra.mxu0 %v668
    %893 = vmatprep.subr.mxu0 %v671
    %894 = vmatpush1.msra.mxu0 %v670
    %895 = vmatprep.subr.mxu0 %v673
    %896 = vmatpush1.msra.mxu0 %v672
    %897 = vmatprep.subr.mxu0 %v675
    %898 = vmatpush1.msra.mxu0 %v674
    %899 = vmatprep.subr.mxu0 %v677
    %900 = vmatpush1.msra.mxu0 %v676
    %901 = vmatprep.subr.mxu0 0.0
    %902 = vmatpush1.msra.mxu0 0.0
    %903 = vmatprep.subr.mxu0 0.0
    %904 = vmatpush1.msra.mxu0 0.0
    %905 = vmatprep.subr.mxu0 0.0
    %906 = vmatpush1.msra.mxu0 0.0
    %907 = vmatprep.subr.mxu0 0.0
    %908 = vmatpush1.msra.mxu0 0.0
    %909 = vmatprep.subr.mxu0 0.0
    %910 = vmatpush1.msra.mxu0 0.0
    %911 = vmatprep.subr.mxu0 0.0
    %912 = vmatpush1.msra.mxu0 0.0
    %913 = vmatprep.subr.mxu0 0.0
    %914 = vmatpush1.msra.mxu0 0.0
    %915 = vmatprep.subr.mxu0 0.0
    %916 = vmatpush1.msra.mxu0 0.0
    %917 = vmatprep.subr.mxu0 0.0
    %918 = vmatpush1.msra.mxu0 0.0
    %919 = vmatprep.subr.mxu0 0.0
    %920 = vmatpush1.msra.mxu0 0.0
    %921 = vmatprep.subr.mxu0 0.0
    %922 = vmatpush1.msra.mxu0 0.0
    %923 = vmatprep.subr.mxu0 0.0
    %924 = vmatpush1.msra.mxu0 0.0
    %925 = vmatprep.subr.mxu0 0.0
    %926 = vmatpush1.msra.mxu0 0.0
    %927 = vmatprep.subr.mxu0 0.0
    %928 = vmatpush1.msra.mxu0 0.0
    %929 = vmatprep.subr.mxu0 0.0
    %930 = vmatpush1.msra.mxu0 0.0
    %931 = vmatprep.subr.mxu0 0.0
    %932 = vmatpush1.msra.mxu0 0.0
    %933 = vmatprep.mubr.f32.mxu0 0.0
    %934 = vmatmul.mubr.f32.gmra.mrb[0].mxu0 %v868
    %v935 = vpop.f32.mrb[0].mxu0
    %v936 = vadd.f32 0.0, %v935
    %v937 = vpop.f32.mrb[0].mxu0
    %v938 = vadd.f32 0.0, %v937
    %939 = vdwg.mxu0
    %v940 = vadd.f32 %v304, %v936
    %v941 = vadd.f32 %v305, %v938
    %v942 = vmul.f32 %v940, 0.5
    %v943 = vtanh.pop %v942
    %v944 = vmul.f32 %v943, 0.5
    %v945 = vadd.f32 %v944, 0.5
    %v946 = vmul.f32 %v941, 0.5
    %v947 = vsel %vm680, %v941, %v946
    %v948 = vtanh.pop %v947
    %v949 = vmul.f32 %v948, 0.5
    %v950 = vadd.f32 %v949, 0.5
    %v951 = vsel %vm680, %v948, %v950
    %v952 = vmul.f32 %v945, %v951
    %v953 = vmul.f32 %v945, %v863
    %v954 = vsel %vm680, %v952, %v953
    %955 = vrot.lane.b32.xlu0 %v954, 64
    %v956 = vpop.permute.xlu0 %955
    %v957 = vadd.f32 %v954, %v956
    %958 = vrot.lane.b32.xlu0 %v951, 64
    %v959 = vpop.permute.xlu0 %958
    %v960 = vsel %vm680, %v959, %v950
    %v961 = vtanh.pop %v957
    %v962 = vmul.f32 %v960, %v961
    %963 = vmatprep.subr.mxu0 %v647
    %964 = vmatpush1.msra.mxu0 %v646
    %965 = vmatprep.subr.mxu0 %v649
    %966 = vmatpush1.msra.mxu0 %v648
    %967 = vmatprep.subr.mxu0 %v651
    %968 = vmatpush1.msra.mxu0 %v650
    %969 = vmatprep.subr.mxu0 %v653
    %970 = vmatpush1.msra.mxu0 %v652
    %971 = vmatprep.subr.mxu0 %v655
    %972 = vmatpush1.msra.mxu0 %v654
    %973 = vmatprep.subr.mxu0 %v657
    %974 = vmatpush1.msra.mxu0 %v656
    %975 = vmatprep.subr.mxu0 %v659
    %976 = vmatpush1.msra.mxu0 %v658
    %977 = vmatprep.subr.mxu0 %v661
    %978 = vmatpush1.msra.mxu0 %v660
    %979 = vmatprep.subr.mxu0 %v663
    %980 = vmatpush1.msra.mxu0 %v662
    %981 = vmatprep.subr.mxu0 %v665
    %982 = vmatpush1.msra.mxu0 %v664
    %983 = vmatprep.subr.mxu0 %v667
    %984 = vmatpush1.msra.mxu0 %v666
    %985 = vmatprep.subr.mxu0 %v669
    %986 = vmatpush1.msra.mxu0 %v668
    %987 = vmatprep.subr.mxu0 %v671
    %988 = vmatpush1.msra.mxu0 %v670
    %989 = vmatprep.subr.mxu0 %v673
    %990 = vmatpush1.msra.mxu0 %v672
    %991 = vmatprep.subr.mxu0 %v675
    %992 = vmatpush1.msra.mxu0 %v674
    %993 = vmatprep.subr.mxu0 %v677
    %994 = vmatpush1.msra.mxu0 %v676
    %995 = vmatprep.subr.mxu0 0.0
    %996 = vmatpush1.msra.mxu0 0.0
    %997 = vmatprep.subr.mxu0 0.0
    %998 = vmatpush1.msra.mxu0 0.0
    %999 = vmatprep.subr.mxu0 0.0
    %1000 = vmatpush1.msra.mxu0 0.0
    %1001 = vmatprep.subr.mxu0 0.0
    %1002 = vmatpush1.msra.mxu0 0.0
    %1003 = vmatprep.subr.mxu0 0.0
    %1004 = vmatpush1.msra.mxu0 0.0
    %1005 = vmatprep.subr.mxu0 0.0
    %1006 = vmatpush1.msra.mxu0 0.0
    %1007 = vmatprep.subr.mxu0 0.0
    %1008 = vmatpush1.msra.mxu0 0.0
    %1009 = vmatprep.subr.mxu0 0.0
    %1010 = vmatpush1.msra.mxu0 0.0
    %1011 = vmatprep.subr.mxu0 0.0
    %1012 = vmatpush1.msra.mxu0 0.0
    %1013 = vmatprep.subr.mxu0 0.0
    %1014 = vmatpush1.msra.mxu0 0.0
    %1015 = vmatprep.subr.mxu0 0.0
    %1016 = vmatpush1.msra.mxu0 0.0
    %1017 = vmatprep.subr.mxu0 0.0
    %1018 = vmatpush1.msra.mxu0 0.0
    %1019 = vmatprep.subr.mxu0 0.0
    %1020 = vmatpush1.msra.mxu0 0.0
    %1021 = vmatprep.subr.mxu0 0.0
    %1022 = vmatpush1.msra.mxu0 0.0
    %1023 = vmatprep.subr.mxu0 0.0
    %1024 = vmatpush1.msra.mxu0 0.0
    %1025 = vmatprep.subr.mxu0 0.0
    %1026 = vmatpush1.msra.mxu0 0.0
    %1027 = vmatprep.mubr.f32.mxu0 0.0
    %1028 = vmatmul.mubr.f32.gmra.mrb[0].mxu0 %v962
    %v1029 = vpop.f32.mrb[0].mxu0
    %v1030 = vadd.f32 0.0, %v1029
    %v1031 = vpop.f32.mrb[0].mxu0
    %v1032 = vadd.f32 0.0, %v1031
    %1033 = vdwg.mxu0
    %v1034 = vadd.f32 %v372, %v1030
    %v1035 = vadd.f32 %v373, %v1032
    %v1036 = vmul.f32 %v1034, 0.5
    %v1037 = vtanh.pop %v1036
    %v1038 = vmul.f32 %v1037, 0.5
    %v1039 = vadd.f32 %v1038, 0.5
    %v1040 = vmul.f32 %v1035, 0.5
    %v1041 = vsel %vm680, %v1035, %v1040
    %v1042 = vtanh.pop %v1041
    %v1043 = vmul.f32 %v1042, 0.5
    %v1044 = vadd.f32 %v1043, 0.5
    %v1045 = vsel %vm680, %v1042, %v1044
    %v1046 = vmul.f32 %v1039, %v1045
    %v1047 = vmul.f32 %v1039, %v957
    %v1048 = vsel %vm680, %v1046, %v1047
    %1049 = vrot.lane.b32.xlu0 %v1048, 64
    %v1050 = vpop.permute.xlu0 %1049
    %v1051 = vadd.f32 %v1048, %v1050
    %1052 = vrot.lane.b32.xlu0 %v1045, 64
    %v1053 = vpop.permute.xlu0 %1052
    %v1054 = vsel %vm680, %v1053, %v1044
    %v1055 = vtanh.pop %v1051
    %v1056 = vmul.f32 %v1054, %v1055
    %1057 = vmatprep.subr.mxu0 %v647
    %1058 = vmatpush1.msra.mxu0 %v646
    %1059 = vmatprep.subr.mxu0 %v649
    %1060 = vmatpush1.msra.mxu0 %v648
    %1061 = vmatprep.subr.mxu0 %v651
    %1062 = vmatpush1.msra.mxu0 %v650
    %1063 = vmatprep.subr.mxu0 %v653
    %1064 = vmatpush1.msra.mxu0 %v652
    %1065 = vmatprep.subr.mxu0 %v655
    %1066 = vmatpush1.msra.mxu0 %v654
    %1067 = vmatprep.subr.mxu0 %v657
    %1068 = vmatpush1.msra.mxu0 %v656
    %1069 = vmatprep.subr.mxu0 %v659
    %1070 = vmatpush1.msra.mxu0 %v658
    %1071 = vmatprep.subr.mxu0 %v661
    %1072 = vmatpush1.msra.mxu0 %v660
    %1073 = vmatprep.subr.mxu0 %v663
    %1074 = vmatpush1.msra.mxu0 %v662
    %1075 = vmatprep.subr.mxu0 %v665
    %1076 = vmatpush1.msra.mxu0 %v664
    %1077 = vmatprep.subr.mxu0 %v667
    %1078 = vmatpush1.msra.mxu0 %v666
    %1079 = vmatprep.subr.mxu0 %v669
    %1080 = vmatpush1.msra.mxu0 %v668
    %1081 = vmatprep.subr.mxu0 %v671
    %1082 = vmatpush1.msra.mxu0 %v670
    %1083 = vmatprep.subr.mxu0 %v673
    %1084 = vmatpush1.msra.mxu0 %v672
    %1085 = vmatprep.subr.mxu0 %v675
    %1086 = vmatpush1.msra.mxu0 %v674
    %1087 = vmatprep.subr.mxu0 %v677
    %1088 = vmatpush1.msra.mxu0 %v676
    %1089 = vmatprep.subr.mxu0 0.0
    %1090 = vmatpush1.msra.mxu0 0.0
    %1091 = vmatprep.subr.mxu0 0.0
    %1092 = vmatpush1.msra.mxu0 0.0
    %1093 = vmatprep.subr.mxu0 0.0
    %1094 = vmatpush1.msra.mxu0 0.0
    %1095 = vmatprep.subr.mxu0 0.0
    %1096 = vmatpush1.msra.mxu0 0.0
    %1097 = vmatprep.subr.mxu0 0.0
    %1098 = vmatpush1.msra.mxu0 0.0
    %1099 = vmatprep.subr.mxu0 0.0
    %1100 = vmatpush1.msra.mxu0 0.0
    %1101 = vmatprep.subr.mxu0 0.0
    %1102 = vmatpush1.msra.mxu0 0.0
    %1103 = vmatprep.subr.mxu0 0.0
    %1104 = vmatpush1.msra.mxu0 0.0
    %1105 = vmatprep.subr.mxu0 0.0
    %1106 = vmatpush1.msra.mxu0 0.0
    %1107 = vmatprep.subr.mxu0 0.0
    %1108 = vmatpush1.msra.mxu0 0.0
    %1109 = vmatprep.subr.mxu0 0.0
    %1110 = vmatpush1.msra.mxu0 0.0
    %1111 = vmatprep.subr.mxu0 0.0
    %1112 = vmatpush1.msra.mxu0 0.0
    %1113 = vmatprep.subr.mxu0 0.0
    %1114 = vmatpush1.msra.mxu0 0.0
    %1115 = vmatprep.subr.mxu0 0.0
    %1116 = vmatpush1.msra.mxu0 0.0
    %1117 = vmatprep.subr.mxu0 0.0
    %1118 = vmatpush1.msra.mxu0 0.0
    %1119 = vmatprep.subr.mxu0 0.0
    %1120 = vmatpush1.msra.mxu0 0.0
    %1121 = vmatprep.mubr.f32.mxu0 0.0
    %1122 = vmatmul.mubr.f32.gmra.mrb[0].mxu0 %v1056
    %v1123 = vpop.f32.mrb[0].mxu0
    %v1124 = vadd.f32 0.0, %v1123
    %v1125 = vpop.f32.mrb[0].mxu0
    %v1126 = vadd.f32 0.0, %v1125
    %1127 = vdwg.mxu0
    %v1128 = vadd.f32 %v440, %v1124
    %v1129 = vadd.f32 %v441, %v1126
    %v1130 = vmul.f32 %v1128, 0.5
    %v1131 = vtanh.pop %v1130
    %v1132 = vmul.f32 %v1131, 0.5
    %v1133 = vadd.f32 %v1132, 0.5
    %v1134 = vmul.f32 %v1129, 0.5
    %v1135 = vsel %vm680, %v1129, %v1134
    %v1136 = vtanh.pop %v1135
    %v1137 = vmul.f32 %v1136, 0.5
    %v1138 = vadd.f32 %v1137, 0.5
    %v1139 = vsel %vm680, %v1136, %v1138
    %v1140 = vmul.f32 %v1133, %v1139
    %v1141 = vmul.f32 %v1133, %v1051
    %v1142 = vsel %vm680, %v1140, %v1141
    %1143 = vrot.lane.b32.xlu0 %v1142, 64
    %v1144 = vpop.permute.xlu0 %1143
    %v1145 = vadd.f32 %v1142, %v1144
    %1146 = vrot.lane.b32.xlu0 %v1139, 64
    %v1147 = vpop.permute.xlu0 %1146
    %v1148 = vsel %vm680, %v1147, %v1138
    %v1149 = vtanh.pop %v1145
    %v1150 = vmul.f32 %v1148, %v1149
    %1151 = vmatprep.subr.mxu0 %v647
    %1152 = vmatpush1.msra.mxu0 %v646
    %1153 = vmatprep.subr.mxu0 %v649
    %1154 = vmatpush1.msra.mxu0 %v648
    %1155 = vmatprep.subr.mxu0 %v651
    %1156 = vmatpush1.msra.mxu0 %v650
    %1157 = vmatprep.subr.mxu0 %v653
    %1158 = vmatpush1.msra.mxu0 %v652
    %1159 = vmatprep.subr.mxu0 %v655
    %1160 = vmatpush1.msra.mxu0 %v654
    %1161 = vmatprep.subr.mxu0 %v657
    %1162 = vmatpush1.msra.mxu0 %v656
    %1163 = vmatprep.subr.mxu0 %v659
    %1164 = vmatpush1.msra.mxu0 %v658
    %1165 = vmatprep.subr.mxu0 %v661
    %1166 = vmatpush1.msra.mxu0 %v660
    %1167 = vmatprep.subr.mxu0 %v663
    %1168 = vmatpush1.msra.mxu0 %v662
    %1169 = vmatprep.subr.mxu0 %v665
    %1170 = vmatpush1.msra.mxu0 %v664
    %1171 = vmatprep.subr.mxu0 %v667
    %1172 = vmatpush1.msra.mxu0 %v666
    %1173 = vmatprep.subr.mxu0 %v669
    %1174 = vmatpush1.msra.mxu0 %v668
    %1175 = vmatprep.subr.mxu0 %v671
    %1176 = vmatpush1.msra.mxu0 %v670
    %1177 = vmatprep.subr.mxu0 %v673
    %1178 = vmatpush1.msra.mxu0 %v672
    %1179 = vmatprep.subr.mxu0 %v675
    %1180 = vmatpush1.msra.mxu0 %v674
    %1181 = vmatprep.subr.mxu0 %v677
    %1182 = vmatpush1.msra.mxu0 %v676
    %1183 = vmatprep.subr.mxu0 0.0
    %1184 = vmatpush1.msra.mxu0 0.0
    %1185 = vmatprep.subr.mxu0 0.0
    %1186 = vmatpush1.msra.mxu0 0.0
    %1187 = vmatprep.subr.mxu0 0.0
    %1188 = vmatpush1.msra.mxu0 0.0
    %1189 = vmatprep.subr.mxu0 0.0
    %1190 = vmatpush1.msra.mxu0 0.0
    %1191 = vmatprep.subr.mxu0 0.0
    %1192 = vmatpush1.msra.mxu0 0.0
    %1193 = vmatprep.subr.mxu0 0.0
    %1194 = vmatpush1.msra.mxu0 0.0
    %1195 = vmatprep.subr.mxu0 0.0
    %1196 = vmatpush1.msra.mxu0 0.0
    %1197 = vmatprep.subr.mxu0 0.0
    %1198 = vmatpush1.msra.mxu0 0.0
    %1199 = vmatprep.subr.mxu0 0.0
    %1200 = vmatpush1.msra.mxu0 0.0
    %1201 = vmatprep.subr.mxu0 0.0
    %1202 = vmatpush1.msra.mxu0 0.0
    %1203 = vmatprep.subr.mxu0 0.0
    %1204 = vmatpush1.msra.mxu0 0.0
    %1205 = vmatprep.subr.mxu0 0.0
    %1206 = vmatpush1.msra.mxu0 0.0
    %1207 = vmatprep.subr.mxu0 0.0
    %1208 = vmatpush1.msra.mxu0 0.0
    %1209 = vmatprep.subr.mxu0 0.0
    %1210 = vmatpush1.msra.mxu0 0.0
    %1211 = vmatprep.subr.mxu0 0.0
    %1212 = vmatpush1.msra.mxu0 0.0
    %1213 = vmatprep.subr.mxu0 0.0
    %1214 = vmatpush1.msra.mxu0 0.0
    %1215 = vmatprep.mubr.f32.mxu0 0.0
    %1216 = vmatmul.mubr.f32.gmra.mrb[0].mxu0 %v1150
    %v1217 = vpop.f32.mrb[0].mxu0
    %v1218 = vadd.f32 0.0, %v1217
    %v1219 = vpop.f32.mrb[0].mxu0
    %v1220 = vadd.f32 0.0, %v1219
    %1221 = vdwg.mxu0
    %v1222 = vadd.f32 %v508, %v1218
    %v1223 = vadd.f32 %v509, %v1220
    %v1224 = vmul.f32 %v1222, 0.5
    %v1225 = vtanh.pop %v1224
    %v1226 = vmul.f32 %v1225, 0.5
    %v1227 = vadd.f32 %v1226, 0.5
    %v1228 = vmul.f32 %v1223, 0.5
    %v1229 = vsel %vm680, %v1223, %v1228
    %v1230 = vtanh.pop %v1229
    %v1231 = vmul.f32 %v1230, 0.5
    %v1232 = vadd.f32 %v1231, 0.5
    %v1233 = vsel %vm680, %v1230, %v1232
    %v1234 = vmul.f32 %v1227, %v1233
    %v1235 = vmul.f32 %v1227, %v1145
    %v1236 = vsel %vm680, %v1234, %v1235
    %1237 = vrot.lane.b32.xlu0 %v1236, 64
    %v1238 = vpop.permute.xlu0 %1237
    %v1239 = vadd.f32 %v1236, %v1238
    %1240 = vrot.lane.b32.xlu0 %v1233, 64
    %v1241 = vpop.permute.xlu0 %1240
    %v1242 = vsel %vm680, %v1241, %v1232
    %v1243 = vtanh.pop %v1239
    %v1244 = vmul.f32 %v1242, %v1243
    %1245 = vmatprep.subr.mxu0 %v647
    %1246 = vmatpush1.msra.mxu0 %v646
    %1247 = vmatprep.subr.mxu0 %v649
    %1248 = vmatpush1.msra.mxu0 %v648
    %1249 = vmatprep.subr.mxu0 %v651
    %1250 = vmatpush1.msra.mxu0 %v650
    %1251 = vmatprep.subr.mxu0 %v653
    %1252 = vmatpush1.msra.mxu0 %v652
    %1253 = vmatprep.subr.mxu0 %v655
    %1254 = vmatpush1.msra.mxu0 %v654
    %1255 = vmatprep.subr.mxu0 %v657
    %1256 = vmatpush1.msra.mxu0 %v656
    %1257 = vmatprep.subr.mxu0 %v659
    %1258 = vmatpush1.msra.mxu0 %v658
    %1259 = vmatprep.subr.mxu0 %v661
    %1260 = vmatpush1.msra.mxu0 %v660
    %1261 = vmatprep.subr.mxu0 %v663
    %1262 = vmatpush1.msra.mxu0 %v662
    %1263 = vmatprep.subr.mxu0 %v665
    %1264 = vmatpush1.msra.mxu0 %v664
    %1265 = vmatprep.subr.mxu0 %v667
    %1266 = vmatpush1.msra.mxu0 %v666
    %1267 = vmatprep.subr.mxu0 %v669
    %1268 = vmatpush1.msra.mxu0 %v668
    %1269 = vmatprep.subr.mxu0 %v671
    %1270 = vmatpush1.msra.mxu0 %v670
    %1271 = vmatprep.subr.mxu0 %v673
    %1272 = vmatpush1.msra.mxu0 %v672
    %1273 = vmatprep.subr.mxu0 %v675
    %1274 = vmatpush1.msra.mxu0 %v674
    %1275 = vmatprep.subr.mxu0 %v677
    %1276 = vmatpush1.msra.mxu0 %v676
    %1277 = vmatprep.subr.mxu0 0.0
    %1278 = vmatpush1.msra.mxu0 0.0
    %1279 = vmatprep.subr.mxu0 0.0
    %1280 = vmatpush1.msra.mxu0 0.0
    %1281 = vmatprep.subr.mxu0 0.0
    %1282 = vmatpush1.msra.mxu0 0.0
    %1283 = vmatprep.subr.mxu0 0.0
    %1284 = vmatpush1.msra.mxu0 0.0
    %1285 = vmatprep.subr.mxu0 0.0
    %1286 = vmatpush1.msra.mxu0 0.0
    %1287 = vmatprep.subr.mxu0 0.0
    %1288 = vmatpush1.msra.mxu0 0.0
    %1289 = vmatprep.subr.mxu0 0.0
    %1290 = vmatpush1.msra.mxu0 0.0
    %1291 = vmatprep.subr.mxu0 0.0
    %1292 = vmatpush1.msra.mxu0 0.0
    %1293 = vmatprep.subr.mxu0 0.0
    %1294 = vmatpush1.msra.mxu0 0.0
    %1295 = vmatprep.subr.mxu0 0.0
    %1296 = vmatpush1.msra.mxu0 0.0
    %1297 = vmatprep.subr.mxu0 0.0
    %1298 = vmatpush1.msra.mxu0 0.0
    %1299 = vmatprep.subr.mxu0 0.0
    %1300 = vmatpush1.msra.mxu0 0.0
    %1301 = vmatprep.subr.mxu0 0.0
    %1302 = vmatpush1.msra.mxu0 0.0
    %1303 = vmatprep.subr.mxu0 0.0
    %1304 = vmatpush1.msra.mxu0 0.0
    %1305 = vmatprep.subr.mxu0 0.0
    %1306 = vmatpush1.msra.mxu0 0.0
    %1307 = vmatprep.subr.mxu0 0.0
    %1308 = vmatpush1.msra.mxu0 0.0
    %1309 = vmatprep.mubr.f32.mxu0 0.0
    %1310 = vmatmul.mubr.f32.gmra.mrb[0].mxu0 %v1244
    %v1311 = vpop.f32.mrb[0].mxu0
    %v1312 = vadd.f32 0.0, %v1311
    %v1313 = vpop.f32.mrb[0].mxu0
    %v1314 = vadd.f32 0.0, %v1313
    %1315 = vdwg.mxu0
    %v1316 = vadd.f32 %v576, %v1312
    %v1317 = vadd.f32 %v577, %v1314
    %v1318 = vmul.f32 %v1316, 0.5
    %v1319 = vtanh.pop %v1318
    %v1320 = vmul.f32 %v1319, 0.5
    %v1321 = vadd.f32 %v1320, 0.5
    %v1322 = vmul.f32 %v1317, 0.5
    %v1323 = vsel %vm680, %v1317, %v1322
    %v1324 = vtanh.pop %v1323
    %v1325 = vmul.f32 %v1324, 0.5
    %v1326 = vadd.f32 %v1325, 0.5
    %v1327 = vsel %vm680, %v1324, %v1326
    %v1328 = vmul.f32 %v1321, %v1327
    %v1329 = vmul.f32 %v1321, %v1239
    %v1330 = vsel %vm680, %v1328, %v1329
    %1331 = vrot.lane.b32.xlu0 %v1330, 64
    %v1332 = vpop.permute.xlu0 %1331
    %v1333 = vadd.f32 %v1330, %v1332
    %1334 = vrot.lane.b32.xlu0 %v1327, 64
    %v1335 = vpop.permute.xlu0 %1334
    %v1336 = vsel %vm680, %v1335, %v1326
    %v1337 = vtanh.pop %v1333
    %v1338 = vmul.f32 %v1336, %v1337
    %1339 = vmatprep.subr.mxu0 %v647
    %1340 = vmatpush1.msra.mxu0 %v646
    %1341 = vmatprep.subr.mxu0 %v649
    %1342 = vmatpush1.msra.mxu0 %v648
    %1343 = vmatprep.subr.mxu0 %v651
    %1344 = vmatpush1.msra.mxu0 %v650
    %1345 = vmatprep.subr.mxu0 %v653
    %1346 = vmatpush1.msra.mxu0 %v652
    %1347 = vmatprep.subr.mxu0 %v655
    %1348 = vmatpush1.msra.mxu0 %v654
    %1349 = vmatprep.subr.mxu0 %v657
    %1350 = vmatpush1.msra.mxu0 %v656
    %1351 = vmatprep.subr.mxu0 %v659
    %1352 = vmatpush1.msra.mxu0 %v658
    %1353 = vmatprep.subr.mxu0 %v661
    %1354 = vmatpush1.msra.mxu0 %v660
    %1355 = vmatprep.subr.mxu0 %v663
    %1356 = vmatpush1.msra.mxu0 %v662
    %1357 = vmatprep.subr.mxu0 %v665
    %1358 = vmatpush1.msra.mxu0 %v664
    %1359 = vmatprep.subr.mxu0 %v667
    %1360 = vmatpush1.msra.mxu0 %v666
    %1361 = vmatprep.subr.mxu0 %v669
    %1362 = vmatpush1.msra.mxu0 %v668
    %1363 = vmatprep.subr.mxu0 %v671
    %1364 = vmatpush1.msra.mxu0 %v670
    %1365 = vmatprep.subr.mxu0 %v673
    %1366 = vmatpush1.msra.mxu0 %v672
    %1367 = vmatprep.subr.mxu0 %v675
    %1368 = vmatpush1.msra.mxu0 %v674
    %1369 = vmatprep.subr.mxu0 %v677
    %1370 = vmatpush1.msra.mxu0 %v676
    %1371 = vmatprep.subr.mxu0 0.0
    %1372 = vmatpush1.msra.mxu0 0.0
    %1373 = vmatprep.subr.mxu0 0.0
    %1374 = vmatpush1.msra.mxu0 0.0
    %1375 = vmatprep.subr.mxu0 0.0
    %1376 = vmatpush1.msra.mxu0 0.0
    %1377 = vmatprep.subr.mxu0 0.0
    %1378 = vmatpush1.msra.mxu0 0.0
    %1379 = vmatprep.subr.mxu0 0.0
    %1380 = vmatpush1.msra.mxu0 0.0
    %1381 = vmatprep.subr.mxu0 0.0
    %1382 = vmatpush1.msra.mxu0 0.0
    %1383 = vmatprep.subr.mxu0 0.0
    %1384 = vmatpush1.msra.mxu0 0.0
    %1385 = vmatprep.subr.mxu0 0.0
    %1386 = vmatpush1.msra.mxu0 0.0
    %1387 = vmatprep.subr.mxu0 0.0
    %1388 = vmatpush1.msra.mxu0 0.0
    %1389 = vmatprep.subr.mxu0 0.0
    %1390 = vmatpush1.msra.mxu0 0.0
    %1391 = vmatprep.subr.mxu0 0.0
    %1392 = vmatpush1.msra.mxu0 0.0
    %1393 = vmatprep.subr.mxu0 0.0
    %1394 = vmatpush1.msra.mxu0 0.0
    %1395 = vmatprep.subr.mxu0 0.0
    %1396 = vmatpush1.msra.mxu0 0.0
    %1397 = vmatprep.subr.mxu0 0.0
    %1398 = vmatpush1.msra.mxu0 0.0
    %1399 = vmatprep.subr.mxu0 0.0
    %1400 = vmatpush1.msra.mxu0 0.0
    %1401 = vmatprep.subr.mxu0 0.0
    %1402 = vmatpush1.msra.mxu0 0.0
    %1403 = vmatprep.mubr.f32.mxu0 0.0
    %1404 = vmatmul.mubr.f32.gmra.mrb[0].mxu0 %v1338
    %v1405 = vpop.f32.mrb[0].mxu0
    %v1406 = vadd.f32 0.0, %v1405
    %v1407 = vpop.f32.mrb[0].mxu0
    %v1408 = vadd.f32 0.0, %v1407
    %1409 = vdwg.mxu0
    %v1410 = vadd.f32 %v644, %v1406
    %v1411 = vadd.f32 %v645, %v1408
    %v1412 = vmul.f32 %v1410, 0.5
    %v1413 = vtanh.pop %v1412
    %v1414 = vmul.f32 %v1413, 0.5
    %v1415 = vadd.f32 %v1414, 0.5
    %v1416 = vmul.f32 %v1411, 0.5
    %v1417 = vsel %vm680, %v1411, %v1416
    %v1418 = vtanh.pop %v1417
    %v1419 = vmul.f32 %v1418, 0.5
    %v1420 = vadd.f32 %v1419, 0.5
    %v1421 = vsel %vm680, %v1418, %v1420
    %v1422 = vmul.f32 %v1415, %v1421
    %v1423 = vmul.f32 %v1415, %v1333
    %v1424 = vsel %vm680, %v1422, %v1423
    %1425 = vrot.lane.b32.xlu0 %v1424, 64
    %v1426 = vpop.permute.xlu0 %1425
    %v1427 = vadd.f32 %v1424, %v1426
    %1428 = vrot.lane.b32.xlu0 %v1421, 64
    %v1429 = vpop.permute.xlu0 %1428
    %v1430 = vsel %vm680, %v1429, %v1420
    %v1431 = vtanh.pop %v1427
    %v1432 = vmul.f32 %v1430, %v1431
    %v1433 = vld [vmem:[%s6] sm:$0xff]
    %v1434 = vld [vmem:[%s6 + $0x8] sm:$0xff]
    %v1435 = vld [vmem:[%s6 + $0x10] sm:$0xff]
    %v1436 = vld [vmem:[%s6 + $0x18] sm:$0xff]
    %v1437 = vld [vmem:[%s6 + $0x20] sm:$0xff]
    %v1438 = vld [vmem:[%s6 + $0x28] sm:$0xff]
    %v1439 = vld [vmem:[%s6 + $0x30] sm:$0xff]
    %v1440 = vld [vmem:[%s6 + $0x38] sm:$0xff]
    %v1441 = vld [vmem:[%s6 + $0x40] sm:$0xff]
    %v1442 = vld [vmem:[%s6 + $0x48] sm:$0xff]
    %v1443 = vld [vmem:[%s6 + $0x50] sm:$0xff]
    %v1444 = vld [vmem:[%s6 + $0x58] sm:$0xff]
    %v1445 = vld [vmem:[%s6 + $0x60] sm:$0xff]
    %v1446 = vld [vmem:[%s6 + $0x68] sm:$0xff]
    %v1447 = vld [vmem:[%s6 + $0x70] sm:$0xff]
    %v1448 = vld [vmem:[%s6 + $0x78] sm:$0xff]
    %v1449 = vld [vmem:[%s7] sm:$0x1]
    %v1451 = vlaneseq
    %v1452 = vshrl.u32 %v1451, 7
    %v1453 = vsub.s32 0, %v1452
    %v1454 = vrot.slane %v1449, %v1453
    %1456 = vmatprep.subr.mxu0 0.0
    %1457 = vmatpush1.msra.mxu0 %v1433
    %1458 = vmatprep.subr.mxu0 0.0
    %1459 = vmatpush1.msra.mxu0 %v1434
    %1460 = vmatprep.subr.mxu0 0.0
    %1461 = vmatpush1.msra.mxu0 %v1435
    %1462 = vmatprep.subr.mxu0 0.0
    %1463 = vmatpush1.msra.mxu0 %v1436
    %1464 = vmatprep.subr.mxu0 0.0
    %1465 = vmatpush1.msra.mxu0 %v1437
    %1466 = vmatprep.subr.mxu0 0.0
    %1467 = vmatpush1.msra.mxu0 %v1438
    %1468 = vmatprep.subr.mxu0 0.0
    %1469 = vmatpush1.msra.mxu0 %v1439
    %1470 = vmatprep.subr.mxu0 0.0
    %1471 = vmatpush1.msra.mxu0 %v1440
    %1472 = vmatprep.subr.mxu0 0.0
    %1473 = vmatpush1.msra.mxu0 %v1441
    %1474 = vmatprep.subr.mxu0 0.0
    %1475 = vmatpush1.msra.mxu0 %v1442
    %1476 = vmatprep.subr.mxu0 0.0
    %1477 = vmatpush1.msra.mxu0 %v1443
    %1478 = vmatprep.subr.mxu0 0.0
    %1479 = vmatpush1.msra.mxu0 %v1444
    %1480 = vmatprep.subr.mxu0 0.0
    %1481 = vmatpush1.msra.mxu0 %v1445
    %1482 = vmatprep.subr.mxu0 0.0
    %1483 = vmatpush1.msra.mxu0 %v1446
    %1484 = vmatprep.subr.mxu0 0.0
    %1485 = vmatpush1.msra.mxu0 %v1447
    %1486 = vmatprep.subr.mxu0 0.0
    %1487 = vmatpush1.msra.mxu0 %v1448
    %1488 = vmatprep.subr.mxu0 0.0
    %1489 = vmatpush1.msra.mxu0 0.0
    %1490 = vmatprep.subr.mxu0 0.0
    %1491 = vmatpush1.msra.mxu0 0.0
    %1492 = vmatprep.subr.mxu0 0.0
    %1493 = vmatpush1.msra.mxu0 0.0
    %1494 = vmatprep.subr.mxu0 0.0
    %1495 = vmatpush1.msra.mxu0 0.0
    %1496 = vmatprep.subr.mxu0 0.0
    %1497 = vmatpush1.msra.mxu0 0.0
    %1498 = vmatprep.subr.mxu0 0.0
    %1499 = vmatpush1.msra.mxu0 0.0
    %1500 = vmatprep.subr.mxu0 0.0
    %1501 = vmatpush1.msra.mxu0 0.0
    %1502 = vmatprep.subr.mxu0 0.0
    %1503 = vmatpush1.msra.mxu0 0.0
    %1504 = vmatprep.subr.mxu0 0.0
    %1505 = vmatpush1.msra.mxu0 0.0
    %1506 = vmatprep.subr.mxu0 0.0
    %1507 = vmatpush1.msra.mxu0 0.0
    %1508 = vmatprep.subr.mxu0 0.0
    %1509 = vmatpush1.msra.mxu0 0.0
    %1510 = vmatprep.subr.mxu0 0.0
    %1511 = vmatpush1.msra.mxu0 0.0
    %1512 = vmatprep.subr.mxu0 0.0
    %1513 = vmatpush1.msra.mxu0 0.0
    %1514 = vmatprep.subr.mxu0 0.0
    %1515 = vmatpush1.msra.mxu0 0.0
    %1516 = vmatprep.subr.mxu0 0.0
    %1517 = vmatpush1.msra.mxu0 0.0
    %1518 = vmatprep.subr.mxu0 0.0
    %1519 = vmatpush1.msra.mxu0 0.0
    %1520 = vmatprep.mubr.f32.mxu0 0.0
    %1521 = vmatmul.mubr.f32.gmra.mrb[0].mxu0 %v1432
    %v1522 = vpop.f32.mrb[0].mxu0
    %v1523 = vadd.f32 %v1454, %v1522
    %v1524 = vpop.f32.mrb[0].mxu0
    %1525 = vdwg.mxu0
    %v1526 = vmax.f32 %v1523, 0.0
    %v1527 = vld [vmem:[%s8] sm:$0xff]
    %v1528 = vld [vmem:[%s8 + $0x8] sm:$0xff]
    %v1529 = vld [vmem:[%s8 + $0x10] sm:$0xff]
    %v1530 = vld [vmem:[%s8 + $0x18] sm:$0xff]
    %v1531 = vld [vmem:[%s9] sm:$0x1]
    %v1533 = vlaneseq
    %v1534 = vshrl.u32 %v1533, 7
    %v1535 = vsub.s32 0, %v1534
    %v1536 = vrot.slane %v1531, %v1535
    %vm1538 = vcmask 261120
    %v1540 = vsel %vm1538, %v1526, 0
    %1542 = vmatprep.subr.mxu0 0.0
    %1543 = vmatpush1.msra.mxu0 %v1527
    %1544 = vmatprep.subr.mxu0 0.0
    %1545 = vmatpush1.msra.mxu0 %v1528
    %1546 = vmatprep.subr.mxu0 0.0
    %1547 = vmatpush1.msra.mxu0 %v1529
    %1548 = vmatprep.subr.mxu0 0.0
    %1549 = vmatpush1.msra.mxu0 %v1530
    %1550 = vmatprep.subr.mxu0 0.0
    %1551 = vmatpush1.msra.mxu0 0.0
    %1552 = vmatprep.subr.mxu0 0.0
    %1553 = vmatpush1.msra.mxu0 0.0
    %1554 = vmatprep.subr.mxu0 0.0
    %1555 = vmatpush1.msra.mxu0 0.0
    %1556 = vmatprep.subr.mxu0 0.0
    %1557 = vmatpush1.msra.mxu0 0.0
    %1558 = vmatprep.subr.mxu0 0.0
    %1559 = vmatpush1.msra.mxu0 0.0
    %1560 = vmatprep.subr.mxu0 0.0
    %1561 = vmatpush1.msra.mxu0 0.0
    %1562 = vmatprep.subr.mxu0 0.0
    %1563 = vmatpush1.msra.mxu0 0.0
    %1564 = vmatprep.subr.mxu0 0.0
    %1565 = vmatpush1.msra.mxu0 0.0
    %1566 = vmatprep.subr.mxu0 0.0
    %1567 = vmatpush1.msra.mxu0 0.0
    %1568 = vmatprep.subr.mxu0 0.0
    %1569 = vmatpush1.msra.mxu0 0.0
    %1570 = vmatprep.subr.mxu0 0.0
    %1571 = vmatpush1.msra.mxu0 0.0
    %1572 = vmatprep.subr.mxu0 0.0
    %1573 = vmatpush1.msra.mxu0 0.0
    %1574 = vmatprep.subr.mxu0 0.0
    %1575 = vmatpush1.msra.mxu0 0.0
    %1576 = vmatprep.subr.mxu0 0.0
    %1577 = vmatpush1.msra.mxu0 0.0
    %1578 = vmatprep.subr.mxu0 0.0
    %1579 = vmatpush1.msra.mxu0 0.0
    %1580 = vmatprep.subr.mxu0 0.0
    %1581 = vmatpush1.msra.mxu0 0.0
    %1582 = vmatprep.subr.mxu0 0.0
    %1583 = vmatpush1.msra.mxu0 0.0
    %1584 = vmatprep.subr.mxu0 0.0
    %1585 = vmatpush1.msra.mxu0 0.0
    %1586 = vmatprep.subr.mxu0 0.0
    %1587 = vmatpush1.msra.mxu0 0.0
    %1588 = vmatprep.subr.mxu0 0.0
    %1589 = vmatpush1.msra.mxu0 0.0
    %1590 = vmatprep.subr.mxu0 0.0
    %1591 = vmatpush1.msra.mxu0 0.0
    %1592 = vmatprep.subr.mxu0 0.0
    %1593 = vmatpush1.msra.mxu0 0.0
    %1594 = vmatprep.subr.mxu0 0.0
    %1595 = vmatpush1.msra.mxu0 0.0
    %1596 = vmatprep.subr.mxu0 0.0
    %1597 = vmatpush1.msra.mxu0 0.0
    %1598 = vmatprep.subr.mxu0 0.0
    %1599 = vmatpush1.msra.mxu0 0.0
    %1600 = vmatprep.subr.mxu0 0.0
    %1601 = vmatpush1.msra.mxu0 0.0
    %1602 = vmatprep.subr.mxu0 0.0
    %1603 = vmatpush1.msra.mxu0 0.0
    %1604 = vmatprep.subr.mxu0 0.0
    %1605 = vmatpush1.msra.mxu0 0.0
    %1606 = vmatprep.mubr.f32.mxu0 0.0
    %1607 = vmatmul.mubr.f32.gmra.mrb[0].mxu0 %v1540
    %v1608 = vpop.f32.mrb[0].mxu0
    %v1609 = vadd.f32 %v1536, %v1608
    %v1610 = vpop.f32.mrb[0].mxu0
    %1611 = vdwg.mxu0
    %vm1612 = vcmask 17408
    %1613 = vst.msk [vmem:[#allocation11] sm:$0x3] %vm1612, %v1609
    // Predicated region
    $region58: #{forward.1} parent=1 // pred_check
      _
    $region59: #{forward.1} parent=1 // pred_check_branch
      %1615 = sbr.rel (0) target = $region61
    $region60: #{forward.1} parent=1 // pred_region
      %s1617 = ssub.s32 32, 32
      %1618 = vsyncadd [#allocation4], %s1617
      %s1620 = sshll.u32 [#allocation11], 4
      %s1621 = int_to_ptr.vmem [resolvable:$true] %s1620
      %1623 = dma.vmem_to_hbm [thread:$0]  %s1621, 32, %s10, [#allocation4]
    $region61: #{forward.1} parent=1 // pred_fallthru
      _
    // Predicated region
    $region62: #{forward.1} parent=1 // pred_check
      _
    $region63: #{forward.1} parent=1 // pred_check_branch
      %1625 = sbr.rel (0) target = $region65
    $region64: #{forward.1} parent=1 // pred_region
      %1626 = dma.done [#allocation4], 32
    $region65: #{forward.1} parent=1 // pred_fallthru
      _
    %1627 = vsyncpa [#allocation3], 1
    %1628 = vsyncpa [#allocation10], 1
    %1629 = vsyncpa [#allocation4], 1
    %1630 = vsyncpa [#allocation5], 1
    %1631 = vsyncpa [#allocation7], 1

</llo_original>
